<compile_context>
chip_gen: v6e
topology: v6e:2x2x1
jax: 0.10.0
libtpu: 0.0.40
codegen_flags: <defaults>
</compile_context>

<pallas_src>
import functools

import jax
import jax.numpy as jnp
from jax.experimental import pallas as pl
from jax.experimental.pallas import tpu as pltpu


def _pick_tile(n, cap):
    """Largest lane-dense tile <= cap that divides n (falls back to full n)."""
    if n <= cap:
        return n
    t = (cap // 128) * 128
    while t > 128 and n % t:
        t -= 128
    return t if t >= 128 and n % t == 0 else n


# ------------------------------ fused PAM kernel -----------------------------

def pam_kernel(gamma_ref, w_ref, b_ref, xq_ref, xk_ref, o_ref,
               q_sc, m_sc, l_sc, acc_sc, *, cq):
    ki = pl.program_id(2)

    @pl.when(ki == 0)
    def _():
        m_sc[...] = jnp.full_like(m_sc, -jnp.inf)
        l_sc[...] = jnp.zeros_like(l_sc)
        acc_sc[...] = jnp.zeros_like(acc_sc)
        # q projection for this query tile (bf16 MXU operands, f32 accumulate).
        xq = xq_ref[0].astype(jnp.bfloat16)                        # (C, TQ)
        wq = w_ref[0:cq, :].astype(jnp.bfloat16)                   # (Cq, C)
        q = jnp.dot(wq, xq, preferred_element_type=jnp.float32) + b_ref[0:cq]
        q_sc[...] = q.astype(jnp.bfloat16)                         # (Cq, TQ)

    # k / v projection for this kv tile (recomputed per query tile; projection
    # FLOPs << attention FLOPs once TQ >= 256, and it removes the HBM
    # round-trip of q/k/v).
    xk = xk_ref[0].astype(jnp.bfloat16)                            # (C, TK)
    wkv = w_ref[cq:, :].astype(jnp.bfloat16)                       # (Cq + C, C)
    kv = jnp.dot(wkv, xk, preferred_element_type=jnp.float32) + b_ref[cq:]
    k = kv[0:cq].astype(jnp.bfloat16)                              # (Cq, TK)
    v = kv[cq:].astype(jnp.bfloat16)                               # (C,  TK)

    # scores oriented (TK, TQ): e[j, i] = k_j . q_i   (no explicit transpose)
    e = jax.lax.dot_general(k, q_sc[...],
                            dimension_numbers=(((0,), (0,)), ((), ())),
                            preferred_element_type=jnp.float32)    # (TK, TQ)

    m_prev = m_sc[...]                                             # (1, TQ)
    m_new = jnp.maximum(m_prev, jnp.max(e, axis=0, keepdims=True))
    alpha = jnp.exp(m_prev - m_new)                                # (1, TQ)
    p = jnp.exp(e - m_new)                                         # (TK, TQ) f32

    l_sc[...] = alpha * l_sc[...] + jnp.sum(p, axis=0, keepdims=True)
    acc_sc[...] = alpha * acc_sc[...] + jnp.dot(
        v, p.astype(jnp.bfloat16), preferred_element_type=jnp.float32)  # (C, TQ)
    m_sc[...] = m_new

    @pl.when(ki == pl.num_programs(2) - 1)
    def _():
        gamma = gamma_ref[0, 0]
        attn = acc_sc[...] / l_sc[...]            # exact normalize (once per tile)
        o_ref[0] = (gamma * attn + xq_ref[0]).astype(o_ref.dtype)


def pam_forward(x, gamma, wq, bq, wk, bk, wv, bv, *, tq=None, tk=None):
    """x: (B, C, N) float32 -> (B, C, N) float32 (PAM forward)."""
    B, C, N = x.shape
    cq = wq.shape[0]
    ctot = 2 * cq + C

    # Larger query tiles cut k/v re-streaming; tk=256 fills the 256-wide MXU on
    # v6e/v7x (on v5e, pass tk=128 -- its MXU is 128 wide).
    tq = _pick_tile(N, 512) if tq is None else tq
    tk = _pick_tile(N, 256) if tk is None else tk
    assert N % tq == 0 and N % tk == 0, "N must be a multiple of tq and tk"

    w_fused = jnp.concatenate([wq, wk, wv], axis=0).astype(jnp.float32)       # (ctot, C)
    b_fused = jnp.concatenate([bq, bk, bv], axis=0)[:, None].astype(jnp.float32)
    gamma = jnp.asarray(gamma, jnp.float32).reshape(1, 1)

    # VMEM budget: resident weights + double-buffered x/out blocks + scratch,
    # plus headroom, capped at 48 MiB so it also fits v7x's 64 MiB VMEM.
    f32 = 4
    resident = (ctot * C + ctot) * f32
    dbuf = 2 * (C * tq + C * tk + C * tq) * f32
    scratch = cq * tq * 2 + (2 * tq + C * tq) * f32
    vmem_limit = min(resident + dbuf + scratch + (16 << 20), 48 << 20)

    return pl.pallas_call(
        functools.partial(pam_kernel, cq=cq),
        out_shape=jax.ShapeDtypeStruct((B, C, N), jnp.float32),
        grid_spec=pltpu.PrefetchScalarGridSpec(
            num_scalar_prefetch=0,
            # (batch, query tile) parallel for megacore / v7x (B*N//tq >= 2
            # here); kv axis is the innermost reduction ("arbitrary").
            grid=(B, N // tq, N // tk),
            in_specs=[
                pl.BlockSpec(memory_space=pltpu.MemorySpace.SMEM),         # gamma (1,1)
                pl.BlockSpec((ctot, C), lambda b, qi, ki: (0, 0)),         # fused W (resident)
                pl.BlockSpec((ctot, 1), lambda b, qi, ki: (0, 0)),         # fused bias
                pl.BlockSpec((1, C, tq), lambda b, qi, ki: (b, 0, qi)),    # x (query / residual)
                pl.BlockSpec((1, C, tk), lambda b, qi, ki: (b, 0, ki)),    # x (key / value)
            ],
            out_specs=pl.BlockSpec((1, C, tq), lambda b, qi, ki: (b, 0, qi)),
            scratch_shapes=[
                pltpu.VMEM((cq, tq), jnp.bfloat16),   # q tile (MXU operand)
                pltpu.VMEM((1, tq), jnp.float32),     # running max
                pltpu.VMEM((1, tq), jnp.float32),     # running denominator
                pltpu.VMEM((C, tq), jnp.float32),     # output accumulator
            ],
        ),
        compiler_params=pltpu.CompilerParams(
            dimension_semantics=("parallel", "parallel", "arbitrary"),
            vmem_limit_bytes=vmem_limit),
    )(gamma, w_fused, b_fused, x, x)


# --------------------------------- reference ---------------------------------

def reference(x, gamma, wq, bq, wk, bk, wv, bv):
    """Literal translation of the PyTorch PAM forward in plain JAX (f32)."""
    q = jnp.einsum('oc,bcn->bon', wq, x) + bq[None, :, None]
    k = jnp.einsum('oc,bcn->bon', wk, x) + bk[None, :, None]
    v = jnp.einsum('oc,bcn->bon', wv, x) + bv[None, :, None]
    e = jnp.einsum('bci,bcj->bij', q, k)             # bmm(out1^T, out2)
    a = jax.nn.softmax(e, axis=-1)
    attn = jnp.einsum('bcj,bij->bci', v, a)          # bmm(out3, a^T)
    return gamma[0, 0] * attn + x


if __name__ == "__main__":
    B, C, N = 2, 64, 256
    Cq = C // 8

    key = jax.random.PRNGKey(0)
    ks = jax.random.split(key, 8)
    wq = jax.random.normal(ks[0], (Cq, C), jnp.float32) * 0.1
    bq = jax.random.normal(ks[1], (Cq,), jnp.float32) * 0.1
    wk = jax.random.normal(ks[2], (Cq, C), jnp.float32) * 0.1
    bk = jax.random.normal(ks[3], (Cq,), jnp.float32) * 0.1
    wv = jax.random.normal(ks[4], (C, C), jnp.float32) * 0.1
    bv = jax.random.normal(ks[5], (C,), jnp.float32) * 0.1

    # PyTorch initializes gamma to 0 (output == input); use a nonzero value so
    # the attention path is actually exercised.
    gamma = jnp.full((1, 1), 0.5, dtype=jnp.float32)
    x = jax.random.normal(ks[6], (B, C, N), dtype=jnp.float32)

    out = jax.block_until_ready(pam_forward(x, gamma, wq, bq, wk, bk, wv, bv))
    ref = reference(x, gamma, wq, bq, wk, bk, wv, bv)

    assert out.shape == (B, C, N)
    err = jnp.max(jnp.abs(out - ref))
    # Tolerance re-derived for bf16 MXU operands (per the perf review) plus the
    # flash accumulation order; the reference is exact f32.
    assert jnp.allclose(out, ref, atol=5e-2, rtol=5e-2), f"max abs err {err}"

    print("KERNEL_OK")
</pallas_src>

<mosaic_0001>
module attributes {stable_mosaic.version = 11 : i64} {
  func.func @pam_kernel(%arg0: i32, %arg1: i32, %arg2: i32, %arg3: memref<1x1xf32, #tpu.memory_space<smem>>, %arg4: memref<80x64xf32, #tpu.memory_space<vmem>>, %arg5: memref<80x1xf32, #tpu.memory_space<vmem>>, %arg6: memref<1x64x256xf32, #tpu.memory_space<vmem>>, %arg7: memref<1x64x256xf32, #tpu.memory_space<vmem>>, %arg8: memref<1x64x256xf32, #tpu.memory_space<vmem>>, %arg9: memref<8x256xbf16, #tpu.memory_space<vmem>>, %arg10: memref<1x256xf32, #tpu.memory_space<vmem>>, %arg11: memref<1x256xf32, #tpu.memory_space<vmem>>, %arg12: memref<64x256xf32, #tpu.memory_space<vmem>>) attributes {dimension_semantics = [#tpu.dimension_semantics<parallel>, #tpu.dimension_semantics<parallel>, #tpu.dimension_semantics<arbitrary>], iteration_bounds = array<i64: 2, 1, 1>, scalar_prefetch = 0 : i64, scratch_operands = 4 : i64, tpu.core_type = #tpu.core_type<tc>, window_params = [{transform_indices = @transform_0, window_bounds = array<i64: 1, 1>}, {pipeline_mode = #tpu.pipeline_mode<synchronous>, transform_indices = @transform_1, window_bounds = array<i64: 80, 64>}, {pipeline_mode = #tpu.pipeline_mode<synchronous>, transform_indices = @transform_2, window_bounds = array<i64: 80, 1>}, {transform_indices = @transform_3, window_bounds = array<i64: 1, 64, 256>}, {transform_indices = @transform_4, window_bounds = array<i64: 1, 64, 256>}, {transform_indices = @transform_5, window_bounds = array<i64: 1, 64, 256>}]} {
    %c0_i32 = arith.constant 0 : i32
    %0 = arith.cmpi eq, %arg2, %c0_i32 : i32
    %1 = arith.extui %0 : i1 to i32
    %c0_i32_0 = arith.constant 0 : i32
    %2 = arith.cmpi ne, %1, %c0_i32_0 : i32
    scf.if %2 {
      %cst_26 = arith.constant 0xFF800000 : f32
      %44 = vector.broadcast %cst_26 : f32 to vector<1x256xf32>
      %c0_27 = arith.constant 0 : index
      %c0_28 = arith.constant 0 : index
      %45 = vector.load %arg10[%c0_27, %c0_28] : memref<1x256xf32, #tpu.memory_space<vmem>>, vector<1x256xf32>
      tpu.vector_store %arg10[%c0_27, %c0_28], %44 {strides = array<i32>} : memref<1x256xf32, #tpu.memory_space<vmem>>, vector<1x256xf32>,
      %cst_29 = arith.constant 0.000000e+00 : f32
      %46 = vector.broadcast %cst_29 : f32 to vector<1x256xf32>
      %c0_30 = arith.constant 0 : index
      %c0_31 = arith.constant 0 : index
      %47 = vector.load %arg11[%c0_30, %c0_31] : memref<1x256xf32, #tpu.memory_space<vmem>>, vector<1x256xf32>
      tpu.vector_store %arg11[%c0_30, %c0_31], %46 {strides = array<i32>} : memref<1x256xf32, #tpu.memory_space<vmem>>, vector<1x256xf32>,
      %cst_32 = arith.constant 0.000000e+00 : f32
      %48 = vector.broadcast %cst_32 : f32 to vector<64x256xf32>
      %c0_33 = arith.constant 0 : index
      %c0_34 = arith.constant 0 : index
      %49 = vector.load %arg12[%c0_33, %c0_34] : memref<64x256xf32, #tpu.memory_space<vmem>>, vector<64x256xf32>
      tpu.vector_store %arg12[%c0_33, %c0_34], %48 {strides = array<i32>} : memref<64x256xf32, #tpu.memory_space<vmem>>, vector<64x256xf32>,
      %c0_35 = arith.constant 0 : index
      %c0_36 = arith.constant 0 : index
      %c0_37 = arith.constant 0 : index
      %50 = vector.load %arg6[%c0_35, %c0_36, %c0_37] : memref<1x64x256xf32, #tpu.memory_space<vmem>>, vector<1x64x256xf32>
      %51 = vector.shape_cast %50 : vector<1x64x256xf32> to vector<64x256xf32>
      %52 = arith.truncf %51 : vector<64x256xf32> to vector<64x256xbf16>
      %c0_38 = arith.constant 0 : index
      %c0_39 = arith.constant 0 : index
      %53 = vector.load %arg4[%c0_38, %c0_39] : memref<80x64xf32, #tpu.memory_space<vmem>>, vector<8x64xf32>
      %54 = arith.truncf %53 : vector<8x64xf32> to vector<8x64xbf16>
      %cst_40 = arith.constant dense<0.000000e+00> : vector<8x256xf32>
      %55 = tpu.matmul %54, %52, %cst_40 {dimension_numbers = #tpu.dot_dimension_numbers<[1], [0], [0], [1], [0, 0, 1, 1], [], []>} : vector<8x64xbf16>, vector<64x256xbf16>, vector<8x256xf32> -> vector<8x256xf32>
      %c0_41 = arith.constant 0 : index
      %c0_42 = arith.constant 0 : index
      %56 = vector.load %arg5[%c0_41, %c0_42] : memref<80x1xf32, #tpu.memory_space<vmem>>, vector<8x1xf32>
      %57 = vector.broadcast %56 : vector<8x1xf32> to vector<8x256xf32>
      %58 = arith.addf %55, %57 : vector<8x256xf32>
      %59 = arith.truncf %58 : vector<8x256xf32> to vector<8x256xbf16>
      %c0_43 = arith.constant 0 : index
      %c0_44 = arith.constant 0 : index
      %60 = vector.load %arg9[%c0_43, %c0_44] : memref<8x256xbf16, #tpu.memory_space<vmem>>, vector<8x256xbf16>
      tpu.vector_store %arg9[%c0_43, %c0_44], %59 {strides = array<i32>} : memref<8x256xbf16, #tpu.memory_space<vmem>>, vector<8x256xbf16>,
    } else {
    }
    %c0 = arith.constant 0 : index
    %c0_1 = arith.constant 0 : index
    %c0_2 = arith.constant 0 : index
    %3 = vector.load %arg7[%c0, %c0_1, %c0_2] : memref<1x64x256xf32, #tpu.memory_space<vmem>>, vector<1x64x256xf32>
    %4 = vector.shape_cast %3 : vector<1x64x256xf32> to vector<64x256xf32>
    %5 = arith.truncf %4 : vector<64x256xf32> to vector<64x256xbf16>
    %c8 = arith.constant 8 : index
    %c0_3 = arith.constant 0 : index
    %6 = vector.load %arg4[%c8, %c0_3] : memref<80x64xf32, #tpu.memory_space<vmem>>, vector<72x64xf32>
    %7 = arith.truncf %6 : vector<72x64xf32> to vector<72x64xbf16>
    %cst = arith.constant dense<0.000000e+00> : vector<72x256xf32>
    %8 = tpu.matmul %7, %5, %cst {dimension_numbers = #tpu.dot_dimension_numbers<[1], [0], [0], [1], [0, 0, 1, 1], [], []>} : vector<72x64xbf16>, vector<64x256xbf16>, vector<72x256xf32> -> vector<72x256xf32>
    %c8_4 = arith.constant 8 : index
    %c0_5 = arith.constant 0 : index
    %9 = vector.load %arg5[%c8_4, %c0_5] : memref<80x1xf32, #tpu.memory_space<vmem>>, vector<72x1xf32>
    %10 = vector.broadcast %9 : vector<72x1xf32> to vector<72x256xf32>
    %11 = arith.addf %8, %10 : vector<72x256xf32>
    %12 = vector.extract_strided_slice %11 {offsets = [0, 0], sizes = [8, 256], strides = [1, 1]} : vector<72x256xf32> to vector<8x256xf32>
    %13 = arith.truncf %12 : vector<8x256xf32> to vector<8x256xbf16>
    %14 = vector.extract_strided_slice %11 {offsets = [8, 0], sizes = [64, 256], strides = [1, 1]} : vector<72x256xf32> to vector<64x256xf32>
    %15 = arith.truncf %14 : vector<64x256xf32> to vector<64x256xbf16>
    %c0_6 = arith.constant 0 : index
    %c0_7 = arith.constant 0 : index
    %16 = vector.load %arg9[%c0_6, %c0_7] : memref<8x256xbf16, #tpu.memory_space<vmem>>, vector<8x256xbf16>
    %cst_8 = arith.constant dense<0.000000e+00> : vector<256x256xf32>
    %17 = tpu.matmul %13, %16, %cst_8 {dimension_numbers = #tpu.dot_dimension_numbers<[0], [0], [1], [1], [0, 1, 1, 1], [], []>} : vector<8x256xbf16>, vector<8x256xbf16>, vector<256x256xf32> -> vector<256x256xf32>
    %c0_9 = arith.constant 0 : index
    %c0_10 = arith.constant 0 : index
    %18 = vector.load %arg10[%c0_9, %c0_10] : memref<1x256xf32, #tpu.memory_space<vmem>>, vector<1x256xf32>
    %cst_11 = arith.constant dense<0xFF800000> : vector<256xf32>
    %19 = vector.multi_reduction <maximumf>, %17, %cst_11 [0] : vector<256x256xf32> to vector<256xf32>
    %20 = vector.shape_cast %19 : vector<256xf32> to vector<1x256xf32>
    %21 = arith.maximumf %18, %20 : vector<1x256xf32>
    %22 = arith.subf %18, %21 : vector<1x256xf32>
    %23 = math.exp %22 : vector<1x256xf32>
    %24 = vector.broadcast %21 : vector<1x256xf32> to vector<256x256xf32>
    %25 = arith.subf %17, %24 : vector<256x256xf32>
    %26 = math.exp %25 : vector<256x256xf32>
    %c0_12 = arith.constant 0 : index
    %c0_13 = arith.constant 0 : index
    %27 = vector.load %arg11[%c0_12, %c0_13] : memref<1x256xf32, #tpu.memory_space<vmem>>, vector<1x256xf32>
    %28 = arith.mulf %23, %27 : vector<1x256xf32>
    %cst_14 = arith.constant dense<0.000000e+00> : vector<256xf32>
    %29 = vector.multi_reduction <add>, %26, %cst_14 [0] : vector<256x256xf32> to vector<256xf32>
    %30 = vector.shape_cast %29 : vector<256xf32> to vector<1x256xf32>
    %31 = arith.addf %28, %30 : vector<1x256xf32>
    %c0_15 = arith.constant 0 : index
    %c0_16 = arith.constant 0 : index
    %32 = vector.load %arg11[%c0_15, %c0_16] : memref<1x256xf32, #tpu.memory_space<vmem>>, vector<1x256xf32>
    tpu.vector_store %arg11[%c0_15, %c0_16], %31 {strides = array<i32>} : memref<1x256xf32, #tpu.memory_space<vmem>>, vector<1x256xf32>,
    %c0_17 = arith.constant 0 : index
    %c0_18 = arith.constant 0 : index
    %33 = vector.load %arg12[%c0_17, %c0_18] : memref<64x256xf32, #tpu.memory_space<vmem>>, vector<64x256xf32>
    %34 = vector.broadcast %23 : vector<1x256xf32> to vector<64x256xf32>
    %35 = arith.mulf %34, %33 : vector<64x256xf32>
    %36 = arith.truncf %26 : vector<256x256xf32> to vector<256x256xbf16>
    %cst_19 = arith.constant dense<0.000000e+00> : vector<64x256xf32>
    %37 = tpu.matmul %15, %36, %cst_19 {dimension_numbers = #tpu.dot_dimension_numbers<[1], [0], [0], [1], [0, 0, 1, 1], [], []>} : vector<64x256xbf16>, vector<256x256xbf16>, vector<64x256xf32> -> vector<64x256xf32>
    %38 = arith.addf %35, %37 : vector<64x256xf32>
    %c0_20 = arith.constant 0 : index
    %c0_21 = arith.constant 0 : index
    %39 = vector.load %arg12[%c0_20, %c0_21] : memref<64x256xf32, #tpu.memory_space<vmem>>, vector<64x256xf32>
    tpu.vector_store %arg12[%c0_20, %c0_21], %38 {strides = array<i32>} : memref<64x256xf32, #tpu.memory_space<vmem>>, vector<64x256xf32>,
    %c0_22 = arith.constant 0 : index
    %c0_23 = arith.constant 0 : index
    %40 = vector.load %arg10[%c0_22, %c0_23] : memref<1x256xf32, #tpu.memory_space<vmem>>, vector<1x256xf32>
    tpu.vector_store %arg10[%c0_22, %c0_23], %21 {strides = array<i32>} : memref<1x256xf32, #tpu.memory_space<vmem>>, vector<1x256xf32>,
    %c0_i32_24 = arith.constant 0 : i32
    %41 = arith.cmpi eq, %arg2, %c0_i32_24 : i32
    %42 = arith.extui %41 : i1 to i32
    %c0_i32_25 = arith.constant 0 : i32
    %43 = arith.cmpi ne, %42, %c0_i32_25 : i32
    scf.if %43 {
      %c0_26 = arith.constant 0 : index
      %c0_27 = arith.constant 0 : index
      %44 = memref.load %arg3[%c0_26, %c0_27] : memref<1x1xf32, #tpu.memory_space<smem>>
      %c0_28 = arith.constant 0 : index
      %c0_29 = arith.constant 0 : index
      %45 = vector.load %arg12[%c0_28, %c0_29] : memref<64x256xf32, #tpu.memory_space<vmem>>, vector<64x256xf32>
      %c0_30 = arith.constant 0 : index
      %c0_31 = arith.constant 0 : index
      %46 = vector.load %arg11[%c0_30, %c0_31] : memref<1x256xf32, #tpu.memory_space<vmem>>, vector<1x256xf32>
      %47 = vector.broadcast %46 : vector<1x256xf32> to vector<64x256xf32>
      %48 = arith.divf %45, %47 : vector<64x256xf32>
      %49 = vector.broadcast %44 : f32 to vector<64x256xf32>
      %50 = arith.mulf %49, %48 : vector<64x256xf32>
      %c0_32 = arith.constant 0 : index
      %c0_33 = arith.constant 0 : index
      %c0_34 = arith.constant 0 : index
      %51 = vector.load %arg6[%c0_32, %c0_33, %c0_34] : memref<1x64x256xf32, #tpu.memory_space<vmem>>, vector<1x64x256xf32>
      %52 = vector.shape_cast %51 : vector<1x64x256xf32> to vector<64x256xf32>
      %53 = arith.addf %50, %52 : vector<64x256xf32>
      %c0_35 = arith.constant 0 : index
      %c0_36 = arith.constant 0 : index
      %c0_37 = arith.constant 0 : index
      %54 = vector.load %arg8[%c0_35, %c0_36, %c0_37] : memref<1x64x256xf32, #tpu.memory_space<vmem>>, vector<1x64x256xf32>
      %55 = vector.shape_cast %54 : vector<1x64x256xf32> to vector<64x256xf32>
      %56 = vector.shape_cast %53 : vector<64x256xf32> to vector<1x64x256xf32>
      tpu.vector_store %arg8[%c0_35, %c0_36, %c0_37], %56 {strides = array<i32>} : memref<1x64x256xf32, #tpu.memory_space<vmem>>, vector<1x64x256xf32>,
    } else {
    }
    return
  }
  func.func @transform_0(%arg0: i32, %arg1: i32, %arg2: i32) -> (i32, i32) {
    %c0_i32 = arith.constant 0 : i32
    %c0_i32_0 = arith.constant 0 : i32
    %c0_i32_1 = arith.constant 0 : i32
    return %c0_i32, %c0_i32_0 : i32, i32
  }
  func.func @transform_1(%arg0: i32, %arg1: i32, %arg2: i32) -> (i32, i32) {
    %c0_i32 = arith.constant 0 : i32
    %c0_i32_0 = arith.constant 0 : i32
    %c0_i32_1 = arith.constant 0 : i32
    return %c0_i32, %c0_i32_0 : i32, i32
  }
  func.func @transform_2(%arg0: i32, %arg1: i32, %arg2: i32) -> (i32, i32) {
    %c0_i32 = arith.constant 0 : i32
    %c0_i32_0 = arith.constant 0 : i32
    %c0_i32_1 = arith.constant 0 : i32
    return %c0_i32, %c0_i32_0 : i32, i32
  }
  func.func @transform_3(%arg0: i32, %arg1: i32, %arg2: i32) -> (i32, i32, i32) {
    %c0_i32 = arith.constant 0 : i32
    %c0_i32_0 = arith.constant 0 : i32
    return %arg0, %c0_i32, %arg1 : i32, i32, i32
  }
  func.func @transform_4(%arg0: i32, %arg1: i32, %arg2: i32) -> (i32, i32, i32) {
    %c0_i32 = arith.constant 0 : i32
    %c0_i32_0 = arith.constant 0 : i32
    return %arg0, %c0_i32, %arg2 : i32, i32, i32
  }
  func.func @transform_5(%arg0: i32, %arg1: i32, %arg2: i32) -> (i32, i32, i32) {
    %c0_i32 = arith.constant 0 : i32
    %c0_i32_0 = arith.constant 0 : i32
    return %arg0, %c0_i32, %arg1 : i32, i32, i32
  }
}

</mosaic_0001>

<llo_original>
// kernel: tpu_custom_call.1
$region0: #{tpu_custom_call.1}
  #allocation0 [shape = 'u32[]', space=smem, size = 0x4, offset = 0x4, fixed_abs, tag = 'smem constant byte address 0x4 - core index']
  #allocation1 [shape = 'u32[144,128]{1,0:T(1,128)}', space=vmem, size = 0x12000, scoped, tag = 'internal scratch']
  #allocation2 [shape = 'bf16[8,256]{1,0:T(8,128)(2,1)}', space=vmem, size = 0x1000, scoped, tag = 'scratch operand']
  #allocation3 [shape = 'f32[1,256]{1,0:T(1,128)}', space=vmem, size = 0x400, scoped, tag = 'scratch operand']
  #allocation4 [shape = 'f32[1,256]{1,0:T(1,128)}', space=vmem, size = 0x400, scoped, tag = 'scratch operand']
  #allocation5 [shape = 'f32[64,256]{1,0:T(8,128)}', space=vmem, size = 0x10000, scoped, tag = 'scratch operand']
  #allocation6 [shape = 'f32[1,1]{1,0:T(1,128)S(6)}', space=smem, size = 0x200, scoped, tag = 'scoped memory for tpu_custom_call.1']
  %s0 = inlined_call_operand.<no memory space> [shape: f32[1,1], index: 0, kind: input, shape index: {}]
  %s1 = inlined_call_operand.vmem [shape: f32[80,64], index: 1, kind: input, shape index: {}]
  %s2 = inlined_call_operand.vmem [shape: f32[80,1], index: 2, kind: input, shape index: {}]
  %s3 = inlined_call_operand.hbm [shape: f32[2,64,256], index: 3, kind: input, shape index: {}]
  %s4 = inlined_call_operand.hbm [shape: f32[2,64,256], index: 4, kind: input, shape index: {}]
  %s5 = inlined_call_operand.hbm [shape: f32[2,64,256], index: 5, kind: output, shape index: {}]
  %s6 = sld [smem:[#allocation0]]
  $region69: #{tpu_custom_call.1} parent=0
    _
  %s8 = ssub.s32 1, %s6
  %s9 = scalar_select 0, %s8, %s6
  %10 = sst [smem:[#allocation6]] %s0
  $region1: #{tpu_custom_call.1} parent=0
    #allocation7 [shape = 'u8[131072]{0}', space=vmem, size = 0x20000, scoped, tag = 'input window, operand 3']
    #allocation8 [shape = 's32[2]{0}', space=sflag, size = 0x8, scoped, tag = 'scoped memory for tpu_custom_call.1']
    #allocation9 [shape = 's32[2]{0}', space=sflag, size = 0x8, scoped, tag = 'scoped memory for tpu_custom_call.1']
    #allocation10 [shape = 'u8[131072]{0}', space=vmem, size = 0x20000, scoped, tag = 'input window, operand 4']
    #allocation11 [shape = 's32[2]{0}', space=sflag, size = 0x8, scoped, tag = 'scoped memory for tpu_custom_call.1']
    #allocation12 [shape = 'u8[131072]{0}', space=vmem, size = 0x20000, scoped, tag = 'output window, operand 0']
    %11 = vsyncpa [#allocation8], 0
    %s12 = scalar_lea.sflag [#allocation8], 1
    %13 = vsyncpa %s12, 0
    %14 = vsyncpa [#allocation11], 0
    %s15 = scalar_lea.sflag [#allocation11], 1
    %16 = vsyncpa %s15, 0
    %17 = vsyncpa [#allocation9], 0
    %s18 = scalar_lea.sflag [#allocation9], 1
    %19 = vsyncpa %s18, 0
    loop: start=0, step=1, limit=4
    $region2: #{tpu_custom_call.1} parent=1 // loop_pre_header
      _
    $region3: #{tpu_custom_call.1} parent=1 // loop_header
      %s21 = sphi 0, %s25
      %p22 = scmp.ge.s32.totalorder %s21, 4
      %s28 = sphi 0, %s47
      %s29 = sphi 0, %s43
      %s30 = sphi 0, %s39
      %s31 = sphi 0, %s28
      %s32 = sphi 0, %s29
      %s33 = sphi 0, %s30
      %s34 = sphi 0, %s31
      %s35 = sphi 0, %s32
      %s36 = sphi 0, %s33
      %s48 = sphi 0, %s48
      %s50 = sphi 0, %s48
      %s51 = sphi 0, %s50
      %s65 = sphi 0, %s51
      %s69 = sphi 0, %s69
      %s71 = sphi 0, %s69
      %s72 = sphi 0, %s71
      %s86 = sphi 0, %s72
      %s90 = sphi 0, %s90
      %s92 = sphi 0, %s90
      %s93 = sphi 0, %s92
      %s107 = sphi 0, %s93
      %s115 = sphi 0, %s117
      %s118 = sphi 0, %s115
      %s119 = sphi 0, %s118
      %s135 = sphi 0, %s119
      %s143 = sphi 0, %s145
      %s146 = sphi 0, %s143
      %s147 = sphi 0, %s146
      %s163 = sphi 0, %s147
      %s171 = sphi 0, %s173
      %s174 = sphi 0, %s171
      %s175 = sphi 0, %s174
      %s191 = sphi 0, %s175
    $region4: #{tpu_custom_call.1} parent=1 // loop_header_branch
      %24 = sbr.rel (%p22) target = $region8
    $region5: #{tpu_custom_call.1} parent=1 // loop_body
      %s26 = ssub.s32 %s21, 1
      %s27 = ssub.s32 %s21, 2
      %s37 = sadd.s32 1, %s30
      %p38 = scmp.ge.s32.totalorder %s37, 1
      %s39 = scalar_select %p38, 0, %s37
      %s40 = sadd.s32 1, %s29
      %s41 = scalar_select %p38, %s40, %s29
      %p42 = scmp.ge.s32.totalorder %s41, 1
      %s43 = scalar_select %p42, 0, %s41
      %s44 = sadd.s32 1, %s28
      %s45 = scalar_select %p42, %s44, %s28
      %p46 = scmp.ge.s32.totalorder %s45, 2
      %s47 = scalar_select %p46, 0, %s45
      %s49 = sadd.s32 %s48, 1
      %p52 = scmp.eq.s32.totalorder %s21, 1
      %p53 = scmp.ne.s32.totalorder %s48, %s50
      %p54 = scmp.eq.s32.totalorder %s21, 0
      %p55 = por %p53, %p54
      %p56 = scmp.ne.s32.totalorder %s48, %s50
      %p57 = scmp.eq.s32.totalorder %s26, 1
      %p58 = por %p56, %p57
      %p59 = scmp.ne.s32.totalorder %s50, %s51
      %p60 = scmp.eq.s32.totalorder %s26, 0
      %p61 = por %p59, %p60
      %p62 = scmp.ne.s32.totalorder %s50, %s51
      %p63 = scmp.eq.s32.totalorder %s27, 1
      %p64 = por %p62, %p63
      %p66 = scmp.ne.s32.totalorder %s51, %s65
      %p67 = scmp.eq.s32.totalorder %s27, 0
      %p68 = por %p66, %p67
      %s70 = sadd.s32 %s69, 1
      %p73 = scmp.eq.s32.totalorder %s21, 1
      %p74 = scmp.ne.s32.totalorder %s69, %s71
      %p75 = scmp.eq.s32.totalorder %s21, 0
      %p76 = por %p74, %p75
      %p77 = scmp.ne.s32.totalorder %s69, %s71
      %p78 = scmp.eq.s32.totalorder %s26, 1
      %p79 = por %p77, %p78
      %p80 = scmp.ne.s32.totalorder %s71, %s72
      %p81 = scmp.eq.s32.totalorder %s26, 0
      %p82 = por %p80, %p81
      %p83 = scmp.ne.s32.totalorder %s71, %s72
      %p84 = scmp.eq.s32.totalorder %s27, 1
      %p85 = por %p83, %p84
      %p87 = scmp.ne.s32.totalorder %s72, %s86
      %p88 = scmp.eq.s32.totalorder %s27, 0
      %p89 = por %p87, %p88
      %s91 = sadd.s32 %s90, 1
      %p94 = scmp.eq.s32.totalorder %s21, 1
      %p95 = scmp.ne.s32.totalorder %s90, %s92
      %p96 = scmp.eq.s32.totalorder %s21, 0
      %p97 = por %p95, %p96
      %p98 = scmp.ne.s32.totalorder %s90, %s92
      %p99 = scmp.eq.s32.totalorder %s26, 1
      %p100 = por %p98, %p99
      %p101 = scmp.ne.s32.totalorder %s92, %s93
      %p102 = scmp.eq.s32.totalorder %s26, 0
      %p103 = por %p101, %p102
      %p104 = scmp.ne.s32.totalorder %s92, %s93
      %p105 = scmp.eq.s32.totalorder %s27, 1
      %p106 = por %p104, %p105
      %p108 = scmp.ne.s32.totalorder %s93, %s107
      %p109 = scmp.eq.s32.totalorder %s27, 0
      %p110 = por %p108, %p109
      %s111 = ssub.s32 %s28, %s47
      %s112 = ssub.s32 %s29, %s43
      %s113 = sor.u32 %s111, %s112
      %p114 = scmp.eq.s32.totalorder %s113, 0
      %s116 = sadd.s32 %s115, 1
      %s117 = scalar_select %p114, %s115, %s116
      %p120 = pneg %p114
      %p121 = scmp.eq.s32.totalorder %s21, 1
      %p122 = por %p120, %p121
      %p123 = scmp.ne.s32.totalorder %s115, %s118
      %p124 = scmp.eq.s32.totalorder %s21, 0
      %p125 = por %p123, %p124
      %p126 = scmp.ne.s32.totalorder %s115, %s118
      %p127 = scmp.eq.s32.totalorder %s26, 1
      %p128 = por %p126, %p127
      %p129 = scmp.ne.s32.totalorder %s118, %s119
      %p130 = scmp.eq.s32.totalorder %s26, 0
      %p131 = por %p129, %p130
      %p132 = scmp.ne.s32.totalorder %s118, %s119
      %p133 = scmp.eq.s32.totalorder %s27, 1
      %p134 = por %p132, %p133
      %p136 = scmp.ne.s32.totalorder %s119, %s135
      %p137 = scmp.eq.s32.totalorder %s27, 0
      %p138 = por %p136, %p137
      %s139 = ssub.s32 %s28, %s47
      %s140 = ssub.s32 %s30, %s39
      %s141 = sor.u32 %s139, %s140
      %p142 = scmp.eq.s32.totalorder %s141, 0
      %s144 = sadd.s32 %s143, 1
      %s145 = scalar_select %p142, %s143, %s144
      %p148 = pneg %p142
      %p149 = scmp.eq.s32.totalorder %s21, 1
      %p150 = por %p148, %p149
      %p151 = scmp.ne.s32.totalorder %s143, %s146
      %p152 = scmp.eq.s32.totalorder %s21, 0
      %p153 = por %p151, %p152
      %p154 = scmp.ne.s32.totalorder %s143, %s146
      %p155 = scmp.eq.s32.totalorder %s26, 1
      %p156 = por %p154, %p155
      %p157 = scmp.ne.s32.totalorder %s146, %s147
      %p158 = scmp.eq.s32.totalorder %s26, 0
      %p159 = por %p157, %p158
      %p160 = scmp.ne.s32.totalorder %s146, %s147
      %p161 = scmp.eq.s32.totalorder %s27, 1
      %p162 = por %p160, %p161
      %p164 = scmp.ne.s32.totalorder %s147, %s163
      %p165 = scmp.eq.s32.totalorder %s27, 0
      %p166 = por %p164, %p165
      %s167 = ssub.s32 %s28, %s47
      %s168 = ssub.s32 %s29, %s43
      %s169 = sor.u32 %s167, %s168
      %p170 = scmp.eq.s32.totalorder %s169, 0
      %s172 = sadd.s32 %s171, 1
      %s173 = scalar_select %p170, %s171, %s172
      %p176 = pneg %p170
      %p177 = scmp.eq.s32.totalorder %s21, 1
      %p178 = por %p176, %p177
      %p179 = scmp.ne.s32.totalorder %s171, %s174
      %p180 = scmp.eq.s32.totalorder %s21, 0
      %p181 = por %p179, %p180
      %p182 = scmp.ne.s32.totalorder %s171, %s174
      %p183 = scmp.eq.s32.totalorder %s26, 1
      %p184 = por %p182, %p183
      %p185 = scmp.ne.s32.totalorder %s174, %s175
      %p186 = scmp.eq.s32.totalorder %s26, 0
      %p187 = por %p185, %p186
      %p188 = scmp.ne.s32.totalorder %s174, %s175
      %p189 = scmp.eq.s32.totalorder %s27, 1
      %p190 = por %p188, %p189
      %p192 = scmp.ne.s32.totalorder %s175, %s191
      %p193 = scmp.eq.s32.totalorder %s27, 0
      %p194 = por %p192, %p193
      %p195 = scmp.le.s32.totalorder 1, %s21
      %p196 = scmp.lt.s32.totalorder %s21, 3
      %p197 = pnand %p195, %p196
      %p198 = pneg %p197
      // Predicated region
      $region9: #{tpu_custom_call.1} parent=5 // pred_check
        _
      $region10: #{tpu_custom_call.1} parent=5 // pred_check_branch
        %200 = sbr.rel (%p197) target = $region12
      $region11: #{tpu_custom_call.1} parent=5 // pred_region
        %s201 = ssub.s32 %s21, 1
        // Predicated region
        $region13: #{tpu_custom_call.1} parent=11 // pred_check
          %p202 = pneg %p61
        $region14: #{tpu_custom_call.1} parent=11 // pred_check_branch
          %204 = sbr.rel (%p202) target = $region16
        $region15: #{tpu_custom_call.1} parent=11 // pred_region
          _
        $region16: #{tpu_custom_call.1} parent=11 // pred_fallthru
          _
        // Predicated region
        $region17: #{tpu_custom_call.1} parent=11 // pred_check
          %p205 = pneg %p82
        $region18: #{tpu_custom_call.1} parent=11 // pred_check_branch
          %207 = sbr.rel (%p205) target = $region20
        $region19: #{tpu_custom_call.1} parent=11 // pred_region
          _
        $region20: #{tpu_custom_call.1} parent=11 // pred_fallthru
          _
        // Predicated region
        $region21: #{tpu_custom_call.1} parent=11 // pred_check
          %p208 = pneg %p103
        $region22: #{tpu_custom_call.1} parent=11 // pred_check_branch
          %210 = sbr.rel (%p208) target = $region24
        $region23: #{tpu_custom_call.1} parent=11 // pred_region
          _
        $region24: #{tpu_custom_call.1} parent=11 // pred_fallthru
          _
      $region12: #{tpu_custom_call.1} parent=5 // pred_fallthru
        _
      %p211 = scmp.lt.s32.totalorder %s21, 2
      // Predicated region
      $region25: #{tpu_custom_call.1} parent=5 // pred_check
        %p212 = pneg %p211
      $region26: #{tpu_custom_call.1} parent=5 // pred_check_branch
        %214 = sbr.rel (%p212) target = $region28
      $region27: #{tpu_custom_call.1} parent=5 // pred_region
        // Predicated region
        $region29: #{tpu_custom_call.1} parent=27 // pred_check
          %p215 = pneg %p125
        $region30: #{tpu_custom_call.1} parent=27 // pred_check_branch
          %217 = sbr.rel (%p215) target = $region32
        $region31: #{tpu_custom_call.1} parent=27 // pred_region
          %s218 = sand.u32 %s115, 1
          %s219 = scalar_lea.sflag [#allocation8], %s218
          %s220 = sand.u32 %s115, 1
          %s221 = smul.addr %s220, 128
          %s222 = scalar_lea.vmem [#allocation7], %s221
          %s223 = smul.u32 2, %s29
          %s225 = ssub.s32 2048, 2048
          %226 = vsyncadd %s219, %s225
          %s227 = smul.addr %s28, 16
          %s228 = sadd.s32 %s223, %s227
          %s229 = smul.addr %s228, 128
          %s230 = scalar_lea.hbm %s3, %s229
          %s231 = sshll.u32 %s222, 4
          %s232 = int_to_ptr.vmem [resolvable:$true] %s231
          %237 = dma.hbm_to_vmem [thread:$0]  %s230, 2048, %s232, %s219, 256, 256, 16
        $region32: #{tpu_custom_call.1} parent=27 // pred_fallthru
          _
        // Predicated region
        $region33: #{tpu_custom_call.1} parent=27 // pred_check
          %p238 = pneg %p153
        $region34: #{tpu_custom_call.1} parent=27 // pred_check_branch
          %240 = sbr.rel (%p238) target = $region36
        $region35: #{tpu_custom_call.1} parent=27 // pred_region
          %s241 = sand.u32 %s143, 1
          %s242 = scalar_lea.sflag [#allocation11], %s241
          %s243 = sand.u32 %s143, 1
          %s244 = smul.addr %s243, 128
          %s245 = scalar_lea.vmem [#allocation10], %s244
          %s246 = smul.u32 2, %s30
          %s248 = ssub.s32 2048, 2048
          %249 = vsyncadd %s242, %s248
          %s250 = smul.addr %s28, 16
          %s251 = sadd.s32 %s246, %s250
          %s252 = smul.addr %s251, 128
          %s253 = scalar_lea.hbm %s4, %s252
          %s254 = sshll.u32 %s245, 4
          %s255 = int_to_ptr.vmem [resolvable:$true] %s254
          %260 = dma.hbm_to_vmem [thread:$0]  %s253, 2048, %s255, %s242, 256, 256, 16
        $region36: #{tpu_custom_call.1} parent=27 // pred_fallthru
          _
      $region28: #{tpu_custom_call.1} parent=5 // pred_fallthru
        _
      %p261 = scmp.le.s32.totalorder 1, %s21
      %p262 = scmp.lt.s32.totalorder %s21, 3
      %p263 = pnand %p261, %p262
      %p264 = pneg %p263
      // Predicated region
      $region37: #{tpu_custom_call.1} parent=5 // pred_check
        _
      $region38: #{tpu_custom_call.1} parent=5 // pred_check_branch
        %266 = sbr.rel (%p263) target = $region40
      $region39: #{tpu_custom_call.1} parent=5 // pred_region
        %s267 = ssub.s32 %s21, 1
        %s268 = sand.u32 %s118, 1
        %s269 = scalar_lea.sflag [#allocation8], %s268
        %s270 = sand.u32 %s118, 1
        %s271 = smul.addr %s270, 128
        %s272 = scalar_lea.vmem [#allocation7], %s271
        // Predicated region
        $region41: #{tpu_custom_call.1} parent=39 // pred_check
          %p273 = pneg %p131
        $region42: #{tpu_custom_call.1} parent=39 // pred_check_branch
          %275 = sbr.rel (%p273) target = $region44
        $region43: #{tpu_custom_call.1} parent=39 // pred_region
          %276 = dma.done %s269, 2048
        $region44: #{tpu_custom_call.1} parent=39 // pred_fallthru
          _
        %s277 = sand.u32 %s146, 1
        %s278 = scalar_lea.sflag [#allocation11], %s277
        %s279 = sand.u32 %s146, 1
        %s280 = smul.addr %s279, 128
        %s281 = scalar_lea.vmem [#allocation10], %s280
        // Predicated region
        $region45: #{tpu_custom_call.1} parent=39 // pred_check
          %p282 = pneg %p159
        $region46: #{tpu_custom_call.1} parent=39 // pred_check_branch
          %284 = sbr.rel (%p282) target = $region48
        $region47: #{tpu_custom_call.1} parent=39 // pred_region
          %285 = dma.done %s278, 2048
        $region48: #{tpu_custom_call.1} parent=39 // pred_fallthru
          _
        %p286 = pneg %p61
        %p287 = pneg %p58
        %p288 = pneg %p82
        %p289 = pneg %p79
        %p290 = pneg %p103
        %p291 = pneg %p100
        %s292 = sand.u32 %s118, 1
        %s293 = scalar_lea.sflag [#allocation8], %s292
        %s294 = sand.u32 %s118, 1
        %s295 = smul.addr %s294, 128
        %s296 = scalar_lea.vmem [#allocation7], %s295
        %p297 = pneg %p131
        %p298 = pneg %p128
        %s299 = sand.u32 %s146, 1
        %s300 = scalar_lea.sflag [#allocation11], %s299
        %s301 = sand.u32 %s146, 1
        %s302 = smul.addr %s301, 128
        %s303 = scalar_lea.vmem [#allocation10], %s302
        %p304 = pneg %p159
        %p305 = pneg %p156
        %p306 = pneg %p187
        %p307 = pneg %p184
        %s308 = sand.u32 %s174, 1
        %s309 = scalar_lea.sflag [#allocation9], %s308
        %s310 = sand.u32 %s174, 1
        %s311 = smul.addr %s310, 128
        %s312 = scalar_lea.vmem [#allocation12], %s311
        %s313 = smul.u32 2, %s32
        %s314 = smul.u32 2, %s33
        %s315 = smul.u32 2, %s32
        %p317 = scmp.eq.s32.totalorder %s33, 0
        // Predicated region
        $region49: #{tpu_custom_call.1} parent=39 // pred_check
          %p318 = pneg %p317
        $region50: #{tpu_custom_call.1} parent=39 // pred_check_branch
          %320 = sbr.rel (%p318) target = $region52
        $region51: #{tpu_custom_call.1} parent=39 // pred_region
          %v321 = vlaneseq
          %vm322 = vcmp.ge.s32.totalorder %v321, 0
          %vm323 = vcmp.lt.s32.totalorder %v321, 256
          %vm324 = vmand %vm322, %vm323
          %325 = vst.msk [vmem:[#allocation3] sm:$0x3] %vm324, -inf
          %326 = vst.msk [vmem:[#allocation4] sm:$0x3] %vm324, 0.0
          %327 = vst [vmem:[#allocation5] sm:$0xff] 0.0
          %328 = vst [vmem:[#allocation5 + $0x8] sm:$0xff] 0.0
          %329 = vst [vmem:[#allocation5 + $0x10] sm:$0xff] 0.0
          %330 = vst [vmem:[#allocation5 + $0x18] sm:$0xff] 0.0
          %331 = vst [vmem:[#allocation5 + $0x20] sm:$0xff] 0.0
          %332 = vst [vmem:[#allocation5 + $0x28] sm:$0xff] 0.0
          %333 = vst [vmem:[#allocation5 + $0x30] sm:$0xff] 0.0
          %334 = vst [vmem:[#allocation5 + $0x38] sm:$0xff] 0.0
          %335 = vst [vmem:[#allocation5 + $0x40] sm:$0xff] 0.0
          %336 = vst [vmem:[#allocation5 + $0x48] sm:$0xff] 0.0
          %337 = vst [vmem:[#allocation5 + $0x50] sm:$0xff] 0.0
          %338 = vst [vmem:[#allocation5 + $0x58] sm:$0xff] 0.0
          %339 = vst [vmem:[#allocation5 + $0x60] sm:$0xff] 0.0
          %340 = vst [vmem:[#allocation5 + $0x68] sm:$0xff] 0.0
          %341 = vst [vmem:[#allocation5 + $0x70] sm:$0xff] 0.0
          %342 = vst [vmem:[#allocation5 + $0x78] sm:$0xff] 0.0
          %v343 = vld [vmem:[%s272] sm:$0xff]
          %v344 = vld [vmem:[%s272 + $0x8] sm:$0xff]
          %v345 = vld [vmem:[%s272 + $0x10] sm:$0xff]
          %v346 = vld [vmem:[%s272 + $0x18] sm:$0xff]
          %v347 = vld [vmem:[%s272 + $0x20] sm:$0xff]
          %v348 = vld [vmem:[%s272 + $0x28] sm:$0xff]
          %v349 = vld [vmem:[%s272 + $0x30] sm:$0xff]
          %v350 = vld [vmem:[%s272 + $0x38] sm:$0xff]
          %v351 = vld [vmem:[%s272 + $0x40] sm:$0xff]
          %v352 = vld [vmem:[%s272 + $0x48] sm:$0xff]
          %v353 = vld [vmem:[%s272 + $0x50] sm:$0xff]
          %v354 = vld [vmem:[%s272 + $0x58] sm:$0xff]
          %v355 = vld [vmem:[%s272 + $0x60] sm:$0xff]
          %v356 = vld [vmem:[%s272 + $0x68] sm:$0xff]
          %v357 = vld [vmem:[%s272 + $0x70] sm:$0xff]
          %v358 = vld [vmem:[%s272 + $0x78] sm:$0xff]
          %v359 = vpack.c.bf16 %v345, %v343
          %v360 = vpack.c.bf16 %v346, %v344
          %v361 = vpack.c.bf16 %v349, %v347
          %v362 = vpack.c.bf16 %v350, %v348
          %v363 = vpack.c.bf16 %v353, %v351
          %v364 = vpack.c.bf16 %v354, %v352
          %v365 = vpack.c.bf16 %v357, %v355
          %v366 = vpack.c.bf16 %v358, %v356
          %v367 = vld [vmem:[%s1] sm:$0xff]
          %v368 = vpack.c.bf16 %v367, %v367
          %v369 = vld [vmem:[%s2] sm:$0xff]
          %371 = vset.pattern.permute.xlu0 0
          %372 = vperm.xlu0 %371, %v369
          %v373 = vpop.permute.xlu0 %372
          %vm375 = vcmask 523264
          %v377 = vsel %vm375, %v368, 0
          %379 = vmatprep.subr.bf16.mxu0 0
          %380 = vmatpush1.bf16.msra.mxu0 0
          %381 = vmatprep.subr.bf16.mxu0 0
          %382 = vmatpush1.bf16.msra.mxu0 0
          %383 = vmatprep.subr.bf16.mxu0 0
          %384 = vmatpush1.bf16.msra.mxu0 0
          %385 = vmatprep.subr.bf16.mxu0 0
          %386 = vmatpush1.bf16.msra.mxu0 0
          %387 = vmatprep.subr.bf16.mxu0 %v366
          %388 = vmatpush1.bf16.msra.mxu0 %v365
          %389 = vmatprep.subr.bf16.mxu0 %v364
          %390 = vmatpush1.bf16.msra.mxu0 %v363
          %391 = vmatprep.subr.bf16.mxu0 %v362
          %392 = vmatpush1.bf16.msra.mxu0 %v361
          %393 = vmatprep.subr.bf16.mxu0 %v360
          %394 = vmatpush1.bf16.msra.mxu0 %v359
          %395 = vmatprep.subr.bf16.mxu0 0
          %396 = vmatpush2.bf16.msra.mxu0 0
          %397 = vmatprep.subr.bf16.mxu0 0
          %398 = vmatpush2.bf16.msra.mxu0 0
          %399 = vmatprep.subr.bf16.mxu0 0
          %400 = vmatpush2.bf16.msra.mxu0 0
          %401 = vmatprep.subr.bf16.mxu0 0
          %402 = vmatpush2.bf16.msra.mxu0 0
          %403 = vmatprep.subr.bf16.mxu0 0
          %404 = vmatpush2.bf16.msra.mxu0 0
          %405 = vmatprep.subr.bf16.mxu0 0
          %406 = vmatpush2.bf16.msra.mxu0 0
          %407 = vmatprep.subr.bf16.mxu0 0
          %408 = vmatpush2.bf16.msra.mxu0 0
          %409 = vmatprep.subr.bf16.mxu0 0
          %410 = vmatpush2.bf16.msra.mxu0 0
          %411 = vmatprep.mubr.bf16.mxu0 0
          %412 = vmatmul.mubr.bf16.gmra.mxu0 %v377
          %v413 = vpop.f32.mrf.mxu0
          %v414 = vadd.f32 %v373, %v413
          %v415 = vpop.f32.mrf.mxu0
          %v416 = vadd.f32 %v373, %v415
          %v417 = vpop.f32.mrf.mxu0
          %v418 = vpop.f32.mrf.mxu0
          %419 = vdwg.mxu0
          %v420 = vpack.c.bf16 %v414, %v414
          %v421 = vpack.c.bf16 %v416, %v416
          %v424 = vunpack.c.l.b16 %v420
          %v425 = vunpack.c.l.b16 %v421
          %v426 = vpack.c.b16 %v425, %v424
          %428 = vst [vmem:[#allocation2] sm:$0xff] %v426
        $region52: #{tpu_custom_call.1} parent=39 // pred_fallthru
          _
        %v429 = vld [vmem:[%s281] sm:$0xff]
        %v430 = vld [vmem:[%s281 + $0x8] sm:$0xff]
        %v431 = vld [vmem:[%s281 + $0x10] sm:$0xff]
        %v432 = vld [vmem:[%s281 + $0x18] sm:$0xff]
        %v433 = vld [vmem:[%s281 + $0x20] sm:$0xff]
        %v434 = vld [vmem:[%s281 + $0x28] sm:$0xff]
        %v435 = vld [vmem:[%s281 + $0x30] sm:$0xff]
        %v436 = vld [vmem:[%s281 + $0x38] sm:$0xff]
        %v437 = vld [vmem:[%s281 + $0x40] sm:$0xff]
        %v438 = vld [vmem:[%s281 + $0x48] sm:$0xff]
        %v439 = vld [vmem:[%s281 + $0x50] sm:$0xff]
        %v440 = vld [vmem:[%s281 + $0x58] sm:$0xff]
        %v441 = vld [vmem:[%s281 + $0x60] sm:$0xff]
        %v442 = vld [vmem:[%s281 + $0x68] sm:$0xff]
        %v443 = vld [vmem:[%s281 + $0x70] sm:$0xff]
        %v444 = vld [vmem:[%s281 + $0x78] sm:$0xff]
        %v445 = vpack.c.bf16 %v431, %v429
        %v446 = vpack.c.bf16 %v432, %v430
        %v447 = vpack.c.bf16 %v435, %v433
        %v448 = vpack.c.bf16 %v436, %v434
        %v449 = vpack.c.bf16 %v439, %v437
        %v450 = vpack.c.bf16 %v440, %v438
        %v451 = vpack.c.bf16 %v443, %v441
        %v452 = vpack.c.bf16 %v444, %v442
        %v453 = vld [vmem:[%s1 + $0x8] sm:$0xff]
        %v454 = vld [vmem:[%s1 + $0x10] sm:$0xff]
        %v455 = vld [vmem:[%s1 + $0x18] sm:$0xff]
        %v456 = vld [vmem:[%s1 + $0x20] sm:$0xff]
        %v457 = vld [vmem:[%s1 + $0x28] sm:$0xff]
        %v458 = vld [vmem:[%s1 + $0x30] sm:$0xff]
        %v459 = vld [vmem:[%s1 + $0x38] sm:$0xff]
        %v460 = vld [vmem:[%s1 + $0x40] sm:$0xff]
        %v461 = vld [vmem:[%s1 + $0x48] sm:$0xff]
        %v462 = vpack.c.bf16 %v454, %v453
        %v463 = vpack.c.bf16 %v456, %v455
        %v464 = vpack.c.bf16 %v458, %v457
        %v465 = vpack.c.bf16 %v460, %v459
        %v466 = vpack.c.bf16 %v461, %v461
        %v467 = vld [vmem:[%s2 + $0x8] sm:$0xff]
        %v468 = vld [vmem:[%s2 + $0x10] sm:$0xff]
        %v469 = vld [vmem:[%s2 + $0x18] sm:$0xff]
        %v470 = vld [vmem:[%s2 + $0x20] sm:$0xff]
        %v471 = vld [vmem:[%s2 + $0x28] sm:$0xff]
        %v472 = vld [vmem:[%s2 + $0x30] sm:$0xff]
        %v473 = vld [vmem:[%s2 + $0x38] sm:$0xff]
        %v474 = vld [vmem:[%s2 + $0x40] sm:$0xff]
        %v475 = vld [vmem:[%s2 + $0x48] sm:$0xff]
        %477 = vset.pattern.permute.xlu0 0
        %478 = vperm.xlu0 %477, %v467
        %v479 = vpop.permute.xlu0 %478
        %482 = vset.pattern.permute.xlu0 0
        %483 = vperm.xlu0 %482, %v468
        %v484 = vpop.permute.xlu0 %483
        %487 = vset.pattern.permute.xlu0 0
        %488 = vperm.xlu0 %487, %v469
        %v489 = vpop.permute.xlu0 %488
        %492 = vset.pattern.permute.xlu0 0
        %493 = vperm.xlu0 %492, %v470
        %v494 = vpop.permute.xlu0 %493
        %497 = vset.pattern.permute.xlu0 0
        %498 = vperm.xlu0 %497, %v471
        %v499 = vpop.permute.xlu0 %498
        %502 = vset.pattern.permute.xlu0 0
        %503 = vperm.xlu0 %502, %v472
        %v504 = vpop.permute.xlu0 %503
        %507 = vset.pattern.permute.xlu0 0
        %508 = vperm.xlu0 %507, %v473
        %v509 = vpop.permute.xlu0 %508
        %512 = vset.pattern.permute.xlu0 0
        %513 = vperm.xlu0 %512, %v474
        %v514 = vpop.permute.xlu0 %513
        %517 = vset.pattern.permute.xlu0 0
        %518 = vperm.xlu0 %517, %v475
        %v519 = vpop.permute.xlu0 %518
        %vm521 = vcmask 523264
        %v523 = vsel %vm521, %v462, 0
        %v526 = vsel %vm521, %v463, 0
        %v529 = vsel %vm521, %v464, 0
        %v532 = vsel %vm521, %v465, 0
        %v535 = vsel %vm521, %v466, 0
        %537 = vmatprep.subr.bf16.mxu0 0
        %538 = vmatpush1.bf16.msra.mxu0 0
        %539 = vmatprep.subr.bf16.mxu0 0
        %540 = vmatpush1.bf16.msra.mxu0 0
        %541 = vmatprep.subr.bf16.mxu0 0
        %542 = vmatpush1.bf16.msra.mxu0 0
        %543 = vmatprep.subr.bf16.mxu0 0
        %544 = vmatpush1.bf16.msra.mxu0 0
        %545 = vmatprep.subr.bf16.mxu0 %v452
        %546 = vmatpush1.bf16.msra.mxu0 %v451
        %547 = vmatprep.subr.bf16.mxu0 %v450
        %548 = vmatpush1.bf16.msra.mxu0 %v449
        %549 = vmatprep.subr.bf16.mxu0 %v448
        %550 = vmatpush1.bf16.msra.mxu0 %v447
        %551 = vmatprep.subr.bf16.mxu0 %v446
        %552 = vmatpush1.bf16.msra.mxu0 %v445
        %553 = vmatprep.subr.bf16.mxu0 0
        %554 = vmatpush2.bf16.msra.mxu0 0
        %555 = vmatprep.subr.bf16.mxu0 0
        %556 = vmatpush2.bf16.msra.mxu0 0
        %557 = vmatprep.subr.bf16.mxu0 0
        %558 = vmatpush2.bf16.msra.mxu0 0
        %559 = vmatprep.subr.bf16.mxu0 0
        %560 = vmatpush2.bf16.msra.mxu0 0
        %561 = vmatprep.subr.bf16.mxu0 0
        %562 = vmatpush2.bf16.msra.mxu0 0
        %563 = vmatprep.subr.bf16.mxu0 0
        %564 = vmatpush2.bf16.msra.mxu0 0
        %565 = vmatprep.subr.bf16.mxu0 0
        %566 = vmatpush2.bf16.msra.mxu0 0
        %567 = vmatprep.subr.bf16.mxu0 0
        %568 = vmatpush2.bf16.msra.mxu0 0
        %569 = vmatprep.mubr.bf16.mxu0 0
        %570 = vmatmul.mubr.bf16.gmra.mxu0 %v523
        %v571 = vpop.f32.mrf.mxu0
        %v572 = vadd.f32 %v479, %v571
        %v573 = vpop.f32.mrf.mxu0
        %v574 = vadd.f32 %v479, %v573
        %v575 = vpop.f32.mrf.mxu0
        %v576 = vadd.f32 %v484, %v575
        %v577 = vpop.f32.mrf.mxu0
        %v578 = vadd.f32 %v484, %v577
        %579 = vmatprep.mubr.bf16.mxu0 0
        %580 = vmatmul.mubr.bf16.gmra.mxu0 %v526
        %v581 = vpop.f32.mrf.mxu0
        %v582 = vadd.f32 %v489, %v581
        %v583 = vpop.f32.mrf.mxu0
        %v584 = vadd.f32 %v489, %v583
        %v585 = vpop.f32.mrf.mxu0
        %v586 = vadd.f32 %v494, %v585
        %v587 = vpop.f32.mrf.mxu0
        %v588 = vadd.f32 %v494, %v587
        %589 = vmatprep.mubr.bf16.mxu0 0
        %590 = vmatmul.mubr.bf16.gmra.mxu0 %v529
        %v591 = vpop.f32.mrf.mxu0
        %v592 = vadd.f32 %v499, %v591
        %v593 = vpop.f32.mrf.mxu0
        %v594 = vadd.f32 %v499, %v593
        %v595 = vpop.f32.mrf.mxu0
        %v596 = vadd.f32 %v504, %v595
        %v597 = vpop.f32.mrf.mxu0
        %v598 = vadd.f32 %v504, %v597
        %599 = vmatprep.mubr.bf16.mxu0 0
        %600 = vmatmul.mubr.bf16.gmra.mxu0 %v532
        %v601 = vpop.f32.mrf.mxu0
        %v602 = vadd.f32 %v509, %v601
        %v603 = vpop.f32.mrf.mxu0
        %v604 = vadd.f32 %v509, %v603
        %v605 = vpop.f32.mrf.mxu0
        %v606 = vadd.f32 %v514, %v605
        %v607 = vpop.f32.mrf.mxu0
        %v608 = vadd.f32 %v514, %v607
        %609 = vmatprep.mubr.bf16.mxu0 0
        %610 = vmatmul.mubr.bf16.gmra.mxu0 %v535
        %v611 = vpop.f32.mrf.mxu0
        %v612 = vadd.f32 %v519, %v611
        %v613 = vpop.f32.mrf.mxu0
        %v614 = vadd.f32 %v519, %v613
        %v615 = vpop.f32.mrf.mxu0
        %v616 = vpop.f32.mrf.mxu0
        %617 = vdwg.mxu0
        %v618 = vpack.c.bf16 %v572, %v572
        %v619 = vpack.c.bf16 %v574, %v574
        %v620 = vpack.c.bf16 %v582, %v576
        %v621 = vpack.c.bf16 %v584, %v578
        %v622 = vpack.c.bf16 %v592, %v586
        %v623 = vpack.c.bf16 %v594, %v588
        %v624 = vpack.c.bf16 %v602, %v596
        %v625 = vpack.c.bf16 %v604, %v598
        %v626 = vpack.c.bf16 %v612, %v606
        %v627 = vpack.c.bf16 %v614, %v608
        %v628 = vld [vmem:[#allocation2] sm:$0xff]
        %629 = vxpose.xlu0.c.b16.start [1/8] %v618, 128
        %630 = vxpose.xlu0.c.b16.cont [2/8] 0, 128
        %631 = vxpose.xlu0.c.b16.cont [3/8] 0, 128
        %632 = vxpose.xlu0.c.b16.cont [4/8] 0, 128
        %633 = vxpose.xlu0.c.b16.cont [5/8] 0, 128
        %634 = vxpose.xlu0.c.b16.cont [6/8] 0, 128
        %635 = vxpose.xlu0.c.b16.cont [7/8] 0, 128
        %636 = vxpose.xlu0.c.b16.end [8/8] 0, 128
        %v637 = vpop.trf.xlu0
        %v638 = vpop.trf.xlu0
        %v639 = vpop.trf.xlu0
        %v640 = vpop.trf.xlu0
        %v641 = vpop.trf.xlu0
        %v642 = vpop.trf.xlu0
        %v643 = vpop.trf.xlu0
        %v644 = vpop.trf.xlu0
        %645 = vxpose.xlu0.c.b16.start [1/8] %v619, 128
        %646 = vxpose.xlu0.c.b16.cont [2/8] 0, 128
        %647 = vxpose.xlu0.c.b16.cont [3/8] 0, 128
        %648 = vxpose.xlu0.c.b16.cont [4/8] 0, 128
        %649 = vxpose.xlu0.c.b16.cont [5/8] 0, 128
        %650 = vxpose.xlu0.c.b16.cont [6/8] 0, 128
        %651 = vxpose.xlu0.c.b16.cont [7/8] 0, 128
        %652 = vxpose.xlu0.c.b16.end [8/8] 0, 128
        %v653 = vpop.trf.xlu0
        %v654 = vpop.trf.xlu0
        %v655 = vpop.trf.xlu0
        %v656 = vpop.trf.xlu0
        %v657 = vpop.trf.xlu0
        %v658 = vpop.trf.xlu0
        %v659 = vpop.trf.xlu0
        %v660 = vpop.trf.xlu0
        %v662 = vunpack.c.l.b16 %v628
        %v663 = vunpack.c.h.b16 %v628
        %v664 = vpack.c.b16 %v662, %v662
        %v665 = vpack.c.b16 %v663, %v663
        %vm666 = vcmask 64512
        %v668 = vsel %vm666, %v637, 0
        %v671 = vsel %vm666, %v638, 0
        %v674 = vsel %vm666, %v639, 0
        %v677 = vsel %vm666, %v640, 0
        %v680 = vsel %vm666, %v641, 0
        %v683 = vsel %vm666, %v642, 0
        %v686 = vsel %vm666, %v643, 0
        %v689 = vsel %vm666, %v644, 0
        %v692 = vsel %vm666, %v653, 0
        %v695 = vsel %vm666, %v654, 0
        %v698 = vsel %vm666, %v655, 0
        %v701 = vsel %vm666, %v656, 0
        %v704 = vsel %vm666, %v657, 0
        %v707 = vsel %vm666, %v658, 0
        %v710 = vsel %vm666, %v659, 0
        %v713 = vsel %vm666, %v660, 0
        %vm715 = vcmask 1043456
        %v717 = vsel %vm715, %v664, 0
        %v720 = vsel %vm715, %v665, 0
        %722 = vmatprep.subr.bf16.mxu0 0
        %723 = vmatpush1.bf16.msra.mxu0 0
        %724 = vmatprep.subr.bf16.mxu0 0
        %725 = vmatpush1.bf16.msra.mxu0 0
        %726 = vmatprep.subr.bf16.mxu0 0
        %727 = vmatpush1.bf16.msra.mxu0 0
        %728 = vmatprep.subr.bf16.mxu0 0
        %729 = vmatpush1.bf16.msra.mxu0 0
        %730 = vmatprep.subr.bf16.mxu0 0
        %731 = vmatpush1.bf16.msra.mxu0 0
        %732 = vmatprep.subr.bf16.mxu0 0
        %733 = vmatpush1.bf16.msra.mxu0 0
        %734 = vmatprep.subr.bf16.mxu0 0
        %735 = vmatpush1.bf16.msra.mxu0 0
        %736 = vmatprep.subr.bf16.mxu0 %v720
        %737 = vmatpush1.bf16.msra.mxu0 %v717
        %738 = vmatprep.subr.bf16.mxu0 0
        %739 = vmatpush2.bf16.msra.mxu0 0
        %740 = vmatprep.subr.bf16.mxu0 0
        %741 = vmatpush2.bf16.msra.mxu0 0
        %742 = vmatprep.subr.bf16.mxu0 0
        %743 = vmatpush2.bf16.msra.mxu0 0
        %744 = vmatprep.subr.bf16.mxu0 0
        %745 = vmatpush2.bf16.msra.mxu0 0
        %746 = vmatprep.subr.bf16.mxu0 0
        %747 = vmatpush2.bf16.msra.mxu0 0
        %748 = vmatprep.subr.bf16.mxu0 0
        %749 = vmatpush2.bf16.msra.mxu0 0
        %750 = vmatprep.subr.bf16.mxu0 0
        %751 = vmatpush2.bf16.msra.mxu0 0
        %752 = vmatprep.subr.bf16.mxu0 0
        %753 = vmatpush2.bf16.msra.mxu0 0
        %754 = vmatprep.mubr.bf16.mxu0 0
        %755 = vmatmul.mubr.bf16.gmra.mxu0 %v668
        %v756 = vpop.f32.mrf.mxu0
        %v757 = vadd.f32 0.0, %v756
        %v758 = vpop.f32.mrf.mxu0
        %v759 = vadd.f32 0.0, %v758
        %v760 = vpop.f32.mrf.mxu0
        %v761 = vadd.f32 0.0, %v760
        %v762 = vpop.f32.mrf.mxu0
        %v763 = vadd.f32 0.0, %v762
        %764 = vmatprep.mubr.bf16.mxu0 0
        %765 = vmatmul.mubr.bf16.gmra.mxu0 %v671
        %v766 = vpop.f32.mrf.mxu0
        %v767 = vadd.f32 0.0, %v766
        %v768 = vpop.f32.mrf.mxu0
        %v769 = vadd.f32 0.0, %v768
        %v770 = vpop.f32.mrf.mxu0
        %v771 = vadd.f32 0.0, %v770
        %v772 = vpop.f32.mrf.mxu0
        %v773 = vadd.f32 0.0, %v772
        %774 = vmatprep.mubr.bf16.mxu0 0
        %775 = vmatmul.mubr.bf16.gmra.mxu0 %v674
        %v776 = vpop.f32.mrf.mxu0
        %v777 = vadd.f32 0.0, %v776
        %v778 = vpop.f32.mrf.mxu0
        %v779 = vadd.f32 0.0, %v778
        %v780 = vpop.f32.mrf.mxu0
        %v781 = vadd.f32 0.0, %v780
        %v782 = vpop.f32.mrf.mxu0
        %v783 = vadd.f32 0.0, %v782
        %784 = vmatprep.mubr.bf16.mxu0 0
        %785 = vmatmul.mubr.bf16.gmra.mxu0 %v677
        %v786 = vpop.f32.mrf.mxu0
        %v787 = vadd.f32 0.0, %v786
        %v788 = vpop.f32.mrf.mxu0
        %v789 = vadd.f32 0.0, %v788
        %v790 = vpop.f32.mrf.mxu0
        %v791 = vadd.f32 0.0, %v790
        %v792 = vpop.f32.mrf.mxu0
        %v793 = vadd.f32 0.0, %v792
        %794 = vmatprep.mubr.bf16.mxu0 0
        %795 = vmatmul.mubr.bf16.gmra.mxu0 %v680
        %v796 = vpop.f32.mrf.mxu0
        %v797 = vadd.f32 0.0, %v796
        %v798 = vpop.f32.mrf.mxu0
        %v799 = vadd.f32 0.0, %v798
        %v800 = vpop.f32.mrf.mxu0
        %v801 = vadd.f32 0.0, %v800
        %v802 = vpop.f32.mrf.mxu0
        %v803 = vadd.f32 0.0, %v802
        %804 = vmatprep.mubr.bf16.mxu0 0
        %805 = vmatmul.mubr.bf16.gmra.mxu0 %v683
        %v806 = vpop.f32.mrf.mxu0
        %v807 = vadd.f32 0.0, %v806
        %v808 = vpop.f32.mrf.mxu0
        %v809 = vadd.f32 0.0, %v808
        %v810 = vpop.f32.mrf.mxu0
        %v811 = vadd.f32 0.0, %v810
        %v812 = vpop.f32.mrf.mxu0
        %v813 = vadd.f32 0.0, %v812
        %814 = vmatprep.mubr.bf16.mxu0 0
        %815 = vmatmul.mubr.bf16.gmra.mxu0 %v686
        %v816 = vpop.f32.mrf.mxu0
        %v817 = vadd.f32 0.0, %v816
        %v818 = vpop.f32.mrf.mxu0
        %v819 = vadd.f32 0.0, %v818
        %v820 = vpop.f32.mrf.mxu0
        %v821 = vadd.f32 0.0, %v820
        %v822 = vpop.f32.mrf.mxu0
        %v823 = vadd.f32 0.0, %v822
        %824 = vmatprep.mubr.bf16.mxu0 0
        %825 = vmatmul.mubr.bf16.gmra.mxu0 %v689
        %v826 = vpop.f32.mrf.mxu0
        %v827 = vadd.f32 0.0, %v826
        %v828 = vpop.f32.mrf.mxu0
        %v829 = vadd.f32 0.0, %v828
        %v830 = vpop.f32.mrf.mxu0
        %v831 = vadd.f32 0.0, %v830
        %v832 = vpop.f32.mrf.mxu0
        %v833 = vadd.f32 0.0, %v832
        %834 = vmatprep.mubr.bf16.mxu0 0
        %835 = vmatmul.mubr.bf16.gmra.mxu0 %v692
        %v836 = vpop.f32.mrf.mxu0
        %v837 = vadd.f32 0.0, %v836
        %v838 = vpop.f32.mrf.mxu0
        %v839 = vadd.f32 0.0, %v838
        %v840 = vpop.f32.mrf.mxu0
        %v841 = vadd.f32 0.0, %v840
        %v842 = vpop.f32.mrf.mxu0
        %v843 = vadd.f32 0.0, %v842
        %844 = vmatprep.mubr.bf16.mxu0 0
        %845 = vmatmul.mubr.bf16.gmra.mxu0 %v695
        %v846 = vpop.f32.mrf.mxu0
        %v847 = vadd.f32 0.0, %v846
        %v848 = vpop.f32.mrf.mxu0
        %v849 = vadd.f32 0.0, %v848
        %v850 = vpop.f32.mrf.mxu0
        %v851 = vadd.f32 0.0, %v850
        %v852 = vpop.f32.mrf.mxu0
        %v853 = vadd.f32 0.0, %v852
        %854 = vmatprep.mubr.bf16.mxu0 0
        %855 = vmatmul.mubr.bf16.gmra.mxu0 %v698
        %v856 = vpop.f32.mrf.mxu0
        %v857 = vadd.f32 0.0, %v856
        %v858 = vpop.f32.mrf.mxu0
        %v859 = vadd.f32 0.0, %v858
        %v860 = vpop.f32.mrf.mxu0
        %v861 = vadd.f32 0.0, %v860
        %v862 = vpop.f32.mrf.mxu0
        %v863 = vadd.f32 0.0, %v862
        %864 = vmatprep.mubr.bf16.mxu0 0
        %865 = vmatmul.mubr.bf16.gmra.mxu0 %v701
        %v866 = vpop.f32.mrf.mxu0
        %v867 = vadd.f32 0.0, %v866
        %v868 = vpop.f32.mrf.mxu0
        %v869 = vadd.f32 0.0, %v868
        %v870 = vpop.f32.mrf.mxu0
        %v871 = vadd.f32 0.0, %v870
        %v872 = vpop.f32.mrf.mxu0
        %v873 = vadd.f32 0.0, %v872
        %874 = vmatprep.mubr.bf16.mxu0 0
        %875 = vmatmul.mubr.bf16.gmra.mxu0 %v704
        %v876 = vpop.f32.mrf.mxu0
        %v877 = vadd.f32 0.0, %v876
        %v878 = vpop.f32.mrf.mxu0
        %v879 = vadd.f32 0.0, %v878
        %v880 = vpop.f32.mrf.mxu0
        %v881 = vadd.f32 0.0, %v880
        %v882 = vpop.f32.mrf.mxu0
        %v883 = vadd.f32 0.0, %v882
        %884 = vmatprep.mubr.bf16.mxu0 0
        %885 = vmatmul.mubr.bf16.gmra.mxu0 %v707
        %v886 = vpop.f32.mrf.mxu0
        %v887 = vadd.f32 0.0, %v886
        %v888 = vpop.f32.mrf.mxu0
        %v889 = vadd.f32 0.0, %v888
        %v890 = vpop.f32.mrf.mxu0
        %v891 = vadd.f32 0.0, %v890
        %v892 = vpop.f32.mrf.mxu0
        %v893 = vadd.f32 0.0, %v892
        %894 = vmatprep.mubr.bf16.mxu0 0
        %895 = vmatmul.mubr.bf16.gmra.mxu0 %v710
        %v896 = vpop.f32.mrf.mxu0
        %v897 = vadd.f32 0.0, %v896
        %v898 = vpop.f32.mrf.mxu0
        %v899 = vadd.f32 0.0, %v898
        %v900 = vpop.f32.mrf.mxu0
        %v901 = vadd.f32 0.0, %v900
        %v902 = vpop.f32.mrf.mxu0
        %v903 = vadd.f32 0.0, %v902
        %904 = vmatprep.mubr.bf16.mxu0 0
        %905 = vmatmul.mubr.bf16.gmra.mxu0 %v713
        %v906 = vpop.f32.mrf.mxu0
        %v907 = vadd.f32 0.0, %v906
        %v908 = vpop.f32.mrf.mxu0
        %v909 = vadd.f32 0.0, %v908
        %v910 = vpop.f32.mrf.mxu0
        %v911 = vadd.f32 0.0, %v910
        %v912 = vpop.f32.mrf.mxu0
        %v913 = vadd.f32 0.0, %v912
        %914 = vdwg.mxu0
        %v915 = vld [vmem:[#allocation3] sm:$0x3]
        %v916 = vmax.f32 %v757, %v767
        %v917 = vmax.f32 %v761, %v771
        %v918 = vmax.f32 %v916, %v777
        %v919 = vmax.f32 %v917, %v781
        %v920 = vmax.f32 %v918, %v787
        %v921 = vmax.f32 %v919, %v791
        %v922 = vmax.f32 %v920, %v797
        %v923 = vmax.f32 %v921, %v801
        %v924 = vmax.f32 %v922, %v807
        %v925 = vmax.f32 %v923, %v811
        %v926 = vmax.f32 %v924, %v817
        %v927 = vmax.f32 %v925, %v821
        %v928 = vmax.f32 %v926, %v827
        %v929 = vmax.f32 %v927, %v831
        %v930 = vmax.f32 %v928, %v837
        %v931 = vmax.f32 %v929, %v841
        %v932 = vmax.f32 %v930, %v847
        %v933 = vmax.f32 %v931, %v851
        %v934 = vmax.f32 %v932, %v857
        %v935 = vmax.f32 %v933, %v861
        %v936 = vmax.f32 %v934, %v867
        %v937 = vmax.f32 %v935, %v871
        %v938 = vmax.f32 %v936, %v877
        %v939 = vmax.f32 %v937, %v881
        %v940 = vmax.f32 %v938, %v887
        %v941 = vmax.f32 %v939, %v891
        %v942 = vmax.f32 %v940, %v897
        %v943 = vmax.f32 %v941, %v901
        %v944 = vmax.f32 %v942, %v907
        %v945 = vmax.f32 %v943, %v911
        %v946 = vmax.f32 %v944, %v945
        %v947 = vrot.slane %v946, 4
        %v948 = vmax.f32 %v946, %v947
        %v949 = vrot.slane %v948, 2
        %v950 = vmax.f32 %v948, %v949
        %v951 = vrot.slane %v950, 1
        %v952 = vmax.f32 %v950, %v951
        %v953 = vmax.f32 %v759, %v769
        %v954 = vmax.f32 %v763, %v773
        %v955 = vmax.f32 %v953, %v779
        %v956 = vmax.f32 %v954, %v783
        %v957 = vmax.f32 %v955, %v789
        %v958 = vmax.f32 %v956, %v793
        %v959 = vmax.f32 %v957, %v799
        %v960 = vmax.f32 %v958, %v803
        %v961 = vmax.f32 %v959, %v809
        %v962 = vmax.f32 %v960, %v813
        %v963 = vmax.f32 %v961, %v819
        %v964 = vmax.f32 %v962, %v823
        %v965 = vmax.f32 %v963, %v829
        %v966 = vmax.f32 %v964, %v833
        %v967 = vmax.f32 %v965, %v839
        %v968 = vmax.f32 %v966, %v843
        %v969 = vmax.f32 %v967, %v849
        %v970 = vmax.f32 %v968, %v853
        %v971 = vmax.f32 %v969, %v859
        %v972 = vmax.f32 %v970, %v863
        %v973 = vmax.f32 %v971, %v869
        %v974 = vmax.f32 %v972, %v873
        %v975 = vmax.f32 %v973, %v879
        %v976 = vmax.f32 %v974, %v883
        %v977 = vmax.f32 %v975, %v889
        %v978 = vmax.f32 %v976, %v893
        %v979 = vmax.f32 %v977, %v899
        %v980 = vmax.f32 %v978, %v903
        %v981 = vmax.f32 %v979, %v909
        %v982 = vmax.f32 %v980, %v913
        %v983 = vmax.f32 %v981, %v982
        %v984 = vrot.slane %v983, 4
        %v985 = vmax.f32 %v983, %v984
        %v986 = vrot.slane %v985, 2
        %v987 = vmax.f32 %v985, %v986
        %v988 = vrot.slane %v987, 1
        %v989 = vmax.f32 %v987, %v988
        %v992 = vcombine.low %v952, %v989
        %v994 = vunpack.c.l.s4 1966171168
        %v995 = vunpack.c.0.s8 %v994
        %v996 = vlaneseq
        %v997 = vshrl.u32 %v996, 7
        %v998 = vsub.s32 %v995, %v997
        %v999 = vrot.slane %v992, %v998
        %v1001 = vunpack.c.l.s4 1966171168
        %v1002 = vunpack.c.0.s8 %v1001
        %v1003 = vlaneseq
        %v1004 = vshrl.u32 %v1003, 7
        %v1005 = vsub.s32 %v1002, %v1004
        %v1006 = vrot.slane %v999, %v1005
        %v1008 = vmax.f32 %v915, %v1006
        %v1009 = vsub.f32 %v915, %v1008
        %v1010 = vmul.f32 %v1009, 1.442695
        %v1011 = vpow.pop %v1010
        %v1013 = vlaneseq
        %v1014 = vshrl.u32 %v1013, 7
        %v1015 = vsub.s32 0, %v1014
        %v1016 = vrot.slane %v1008, %v1015
        %v1017 = vlaneseq
        %v1018 = vshrl.u32 %v1017, 7
        %v1019 = vsub.s32 1, %v1018
        %v1020 = vrot.slane %v1008, %v1019
        %v1023 = vsub.f32 %v757, %v1016
        %v1024 = vsub.f32 %v759, %v1020
        %v1025 = vsub.f32 %v761, %v1016
        %v1026 = vsub.f32 %v763, %v1020
        %v1027 = vsub.f32 %v767, %v1016
        %v1028 = vsub.f32 %v769, %v1020
        %v1029 = vsub.f32 %v771, %v1016
        %v1030 = vsub.f32 %v773, %v1020
        %v1031 = vsub.f32 %v777, %v1016
        %v1032 = vsub.f32 %v779, %v1020
        %v1033 = vsub.f32 %v781, %v1016
        %v1034 = vsub.f32 %v783, %v1020
        %v1035 = vsub.f32 %v787, %v1016
        %v1036 = vsub.f32 %v789, %v1020
        %v1037 = vsub.f32 %v791, %v1016
        %v1038 = vsub.f32 %v793, %v1020
        %v1039 = vsub.f32 %v797, %v1016
        %v1040 = vsub.f32 %v799, %v1020
        %v1041 = vsub.f32 %v801, %v1016
        %v1042 = vsub.f32 %v803, %v1020
        %v1043 = vsub.f32 %v807, %v1016
        %v1044 = vsub.f32 %v809, %v1020
        %v1045 = vsub.f32 %v811, %v1016
        %v1046 = vsub.f32 %v813, %v1020
        %v1047 = vsub.f32 %v817, %v1016
        %v1048 = vsub.f32 %v819, %v1020
        %v1049 = vsub.f32 %v821, %v1016
        %v1050 = vsub.f32 %v823, %v1020
        %v1051 = vsub.f32 %v827, %v1016
        %v1052 = vsub.f32 %v829, %v1020
        %v1053 = vsub.f32 %v831, %v1016
        %v1054 = vsub.f32 %v833, %v1020
        %v1055 = vsub.f32 %v837, %v1016
        %v1056 = vsub.f32 %v839, %v1020
        %v1057 = vsub.f32 %v841, %v1016
        %v1058 = vsub.f32 %v843, %v1020
        %v1059 = vsub.f32 %v847, %v1016
        %v1060 = vsub.f32 %v849, %v1020
        %v1061 = vsub.f32 %v851, %v1016
        %v1062 = vsub.f32 %v853, %v1020
        %v1063 = vsub.f32 %v857, %v1016
        %v1064 = vsub.f32 %v859, %v1020
        %v1065 = vsub.f32 %v861, %v1016
        %v1066 = vsub.f32 %v863, %v1020
        %v1067 = vsub.f32 %v867, %v1016
        %v1068 = vsub.f32 %v869, %v1020
        %v1069 = vsub.f32 %v871, %v1016
        %v1070 = vsub.f32 %v873, %v1020
        %v1071 = vsub.f32 %v877, %v1016
        %v1072 = vsub.f32 %v879, %v1020
        %v1073 = vsub.f32 %v881, %v1016
        %v1074 = vsub.f32 %v883, %v1020
        %v1075 = vsub.f32 %v887, %v1016
        %v1076 = vsub.f32 %v889, %v1020
        %v1077 = vsub.f32 %v891, %v1016
        %v1078 = vsub.f32 %v893, %v1020
        %v1079 = vsub.f32 %v897, %v1016
        %v1080 = vsub.f32 %v899, %v1020
        %v1081 = vsub.f32 %v901, %v1016
        %v1082 = vsub.f32 %v903, %v1020
        %v1083 = vsub.f32 %v907, %v1016
        %v1084 = vsub.f32 %v909, %v1020
        %v1085 = vsub.f32 %v911, %v1016
        %v1086 = vsub.f32 %v913, %v1020
        %v1087 = vmul.f32 %v1023, 1.442695
        %v1088 = vpow.pop %v1087
        %v1089 = vmul.f32 %v1024, 1.442695
        %v1090 = vpow.pop %v1089
        %v1091 = vmul.f32 %v1025, 1.442695
        %v1092 = vpow.pop %v1091
        %v1093 = vmul.f32 %v1026, 1.442695
        %v1094 = vpow.pop %v1093
        %v1095 = vmul.f32 %v1027, 1.442695
        %v1096 = vpow.pop %v1095
        %v1097 = vmul.f32 %v1028, 1.442695
        %v1098 = vpow.pop %v1097
        %v1099 = vmul.f32 %v1029, 1.442695
        %v1100 = vpow.pop %v1099
        %v1101 = vmul.f32 %v1030, 1.442695
        %v1102 = vpow.pop %v1101
        %v1103 = vmul.f32 %v1031, 1.442695
        %v1104 = vpow.pop %v1103
        %v1105 = vmul.f32 %v1032, 1.442695
        %v1106 = vpow.pop %v1105
        %v1107 = vmul.f32 %v1033, 1.442695
        %v1108 = vpow.pop %v1107
        %v1109 = vmul.f32 %v1034, 1.442695
        %v1110 = vpow.pop %v1109
        %v1111 = vmul.f32 %v1035, 1.442695
        %v1112 = vpow.pop %v1111
        %v1113 = vmul.f32 %v1036, 1.442695
        %v1114 = vpow.pop %v1113
        %v1115 = vmul.f32 %v1037, 1.442695
        %v1116 = vpow.pop %v1115
        %v1117 = vmul.f32 %v1038, 1.442695
        %v1118 = vpow.pop %v1117
        %v1119 = vmul.f32 %v1039, 1.442695
        %v1120 = vpow.pop %v1119
        %v1121 = vmul.f32 %v1040, 1.442695
        %v1122 = vpow.pop %v1121
        %v1123 = vmul.f32 %v1041, 1.442695
        %v1124 = vpow.pop %v1123
        %v1125 = vmul.f32 %v1042, 1.442695
        %v1126 = vpow.pop %v1125
        %v1127 = vmul.f32 %v1043, 1.442695
        %v1128 = vpow.pop %v1127
        %v1129 = vmul.f32 %v1044, 1.442695
        %v1130 = vpow.pop %v1129
        %v1131 = vmul.f32 %v1045, 1.442695
        %v1132 = vpow.pop %v1131
        %v1133 = vmul.f32 %v1046, 1.442695
        %v1134 = vpow.pop %v1133
        %v1135 = vmul.f32 %v1047, 1.442695
        %v1136 = vpow.pop %v1135
        %v1137 = vmul.f32 %v1048, 1.442695
        %v1138 = vpow.pop %v1137
        %v1139 = vmul.f32 %v1049, 1.442695
        %v1140 = vpow.pop %v1139
        %v1141 = vmul.f32 %v1050, 1.442695
        %v1142 = vpow.pop %v1141
        %v1143 = vmul.f32 %v1051, 1.442695
        %v1144 = vpow.pop %v1143
        %v1145 = vmul.f32 %v1052, 1.442695
        %v1146 = vpow.pop %v1145
        %v1147 = vmul.f32 %v1053, 1.442695
        %v1148 = vpow.pop %v1147
        %v1149 = vmul.f32 %v1054, 1.442695
        %v1150 = vpow.pop %v1149
        %v1151 = vmul.f32 %v1055, 1.442695
        %v1152 = vpow.pop %v1151
        %v1153 = vmul.f32 %v1056, 1.442695
        %v1154 = vpow.pop %v1153
        %v1155 = vmul.f32 %v1057, 1.442695
        %v1156 = vpow.pop %v1155
        %v1157 = vmul.f32 %v1058, 1.442695
        %v1158 = vpow.pop %v1157
        %v1159 = vmul.f32 %v1059, 1.442695
        %v1160 = vpow.pop %v1159
        %v1161 = vmul.f32 %v1060, 1.442695
        %v1162 = vpow.pop %v1161
        %v1163 = vmul.f32 %v1061, 1.442695
        %v1164 = vpow.pop %v1163
        %v1165 = vmul.f32 %v1062, 1.442695
        %v1166 = vpow.pop %v1165
        %v1167 = vmul.f32 %v1063, 1.442695
        %v1168 = vpow.pop %v1167
        %v1169 = vmul.f32 %v1064, 1.442695
        %v1170 = vpow.pop %v1169
        %v1171 = vmul.f32 %v1065, 1.442695
        %v1172 = vpow.pop %v1171
        %v1173 = vmul.f32 %v1066, 1.442695
        %v1174 = vpow.pop %v1173
        %v1175 = vmul.f32 %v1067, 1.442695
        %v1176 = vpow.pop %v1175
        %v1177 = vmul.f32 %v1068, 1.442695
        %v1178 = vpow.pop %v1177
        %v1179 = vmul.f32 %v1069, 1.442695
        %v1180 = vpow.pop %v1179
        %v1181 = vmul.f32 %v1070, 1.442695
        %v1182 = vpow.pop %v1181
        %v1183 = vmul.f32 %v1071, 1.442695
        %v1184 = vpow.pop %v1183
        %v1185 = vmul.f32 %v1072, 1.442695
        %v1186 = vpow.pop %v1185
        %v1187 = vmul.f32 %v1073, 1.442695
        %v1188 = vpow.pop %v1187
        %v1189 = vmul.f32 %v1074, 1.442695
        %v1190 = vpow.pop %v1189
        %v1191 = vmul.f32 %v1075, 1.442695
        %v1192 = vpow.pop %v1191
        %v1193 = vmul.f32 %v1076, 1.442695
        %v1194 = vpow.pop %v1193
        %v1195 = vmul.f32 %v1077, 1.442695
        %v1196 = vpow.pop %v1195
        %v1197 = vmul.f32 %v1078, 1.442695
        %v1198 = vpow.pop %v1197
        %v1199 = vmul.f32 %v1079, 1.442695
        %v1200 = vpow.pop %v1199
        %v1201 = vmul.f32 %v1080, 1.442695
        %v1202 = vpow.pop %v1201
        %v1203 = vmul.f32 %v1081, 1.442695
        %v1204 = vpow.pop %v1203
        %v1205 = vmul.f32 %v1082, 1.442695
        %v1206 = vpow.pop %v1205
        %v1207 = vmul.f32 %v1083, 1.442695
        %v1208 = vpow.pop %v1207
        %v1209 = vmul.f32 %v1084, 1.442695
        %v1210 = vpow.pop %v1209
        %v1211 = vmul.f32 %v1085, 1.442695
        %v1212 = vpow.pop %v1211
        %v1213 = vmul.f32 %v1086, 1.442695
        %v1214 = vpow.pop %v1213
        %v1215 = vld [vmem:[#allocation4] sm:$0x3]
        %v1216 = vmul.f32 %v1011, %v1215
        %v1217 = vadd.f32 %v1088, %v1092
        %v1218 = vadd.f32 %v1217, %v1096
        %v1219 = vadd.f32 %v1218, %v1100
        %v1220 = vadd.f32 %v1219, %v1104
        %v1221 = vadd.f32 %v1220, %v1108
        %v1222 = vadd.f32 %v1221, %v1112
        %v1223 = vadd.f32 %v1222, %v1116
        %v1224 = vadd.f32 %v1223, %v1120
        %v1225 = vadd.f32 %v1224, %v1124
        %v1226 = vadd.f32 %v1225, %v1128
        %v1227 = vadd.f32 %v1226, %v1132
        %v1228 = vadd.f32 %v1227, %v1136
        %v1229 = vadd.f32 %v1228, %v1140
        %v1230 = vadd.f32 %v1229, %v1144
        %v1231 = vadd.f32 %v1230, %v1148
        %v1232 = vadd.f32 %v1231, %v1152
        %v1233 = vadd.f32 %v1232, %v1156
        %v1234 = vadd.f32 %v1233, %v1160
        %v1235 = vadd.f32 %v1234, %v1164
        %v1236 = vadd.f32 %v1235, %v1168
        %v1237 = vadd.f32 %v1236, %v1172
        %v1238 = vadd.f32 %v1237, %v1176
        %v1239 = vadd.f32 %v1238, %v1180
        %v1240 = vadd.f32 %v1239, %v1184
        %v1241 = vadd.f32 %v1240, %v1188
        %v1242 = vadd.f32 %v1241, %v1192
        %v1243 = vadd.f32 %v1242, %v1196
        %v1244 = vadd.f32 %v1243, %v1200
        %v1245 = vadd.f32 %v1244, %v1204
        %v1246 = vadd.f32 %v1245, %v1208
        %v1247 = vadd.f32 %v1246, %v1212
        %v1248 = vrot.slane %v1247, 4
        %v1249 = vadd.f32 %v1247, %v1248
        %v1250 = vrot.slane %v1249, 2
        %v1251 = vadd.f32 %v1249, %v1250
        %v1252 = vrot.slane %v1251, 1
        %v1253 = vadd.f32 %v1251, %v1252
        %v1254 = vadd.f32 %v1090, %v1094
        %v1255 = vadd.f32 %v1254, %v1098
        %v1256 = vadd.f32 %v1255, %v1102
        %v1257 = vadd.f32 %v1256, %v1106
        %v1258 = vadd.f32 %v1257, %v1110
        %v1259 = vadd.f32 %v1258, %v1114
        %v1260 = vadd.f32 %v1259, %v1118
        %v1261 = vadd.f32 %v1260, %v1122
        %v1262 = vadd.f32 %v1261, %v1126
        %v1263 = vadd.f32 %v1262, %v1130
        %v1264 = vadd.f32 %v1263, %v1134
        %v1265 = vadd.f32 %v1264, %v1138
        %v1266 = vadd.f32 %v1265, %v1142
        %v1267 = vadd.f32 %v1266, %v1146
        %v1268 = vadd.f32 %v1267, %v1150
        %v1269 = vadd.f32 %v1268, %v1154
        %v1270 = vadd.f32 %v1269, %v1158
        %v1271 = vadd.f32 %v1270, %v1162
        %v1272 = vadd.f32 %v1271, %v1166
        %v1273 = vadd.f32 %v1272, %v1170
        %v1274 = vadd.f32 %v1273, %v1174
        %v1275 = vadd.f32 %v1274, %v1178
        %v1276 = vadd.f32 %v1275, %v1182
        %v1277 = vadd.f32 %v1276, %v1186
        %v1278 = vadd.f32 %v1277, %v1190
        %v1279 = vadd.f32 %v1278, %v1194
        %v1280 = vadd.f32 %v1279, %v1198
        %v1281 = vadd.f32 %v1280, %v1202
        %v1282 = vadd.f32 %v1281, %v1206
        %v1283 = vadd.f32 %v1282, %v1210
        %v1284 = vadd.f32 %v1283, %v1214
        %v1285 = vrot.slane %v1284, 4
        %v1286 = vadd.f32 %v1284, %v1285
        %v1287 = vrot.slane %v1286, 2
        %v1288 = vadd.f32 %v1286, %v1287
        %v1289 = vrot.slane %v1288, 1
        %v1290 = vadd.f32 %v1288, %v1289
        %v1293 = vcombine.low %v1253, %v1290
        %v1295 = vunpack.c.l.s4 1966171168
        %v1296 = vunpack.c.0.s8 %v1295
        %v1297 = vlaneseq
        %v1298 = vshrl.u32 %v1297, 7
        %v1299 = vsub.s32 %v1296, %v1298
        %v1300 = vrot.slane %v1293, %v1299
        %v1302 = vunpack.c.l.s4 1966171168
        %v1303 = vunpack.c.0.s8 %v1302
        %v1304 = vlaneseq
        %v1305 = vshrl.u32 %v1304, 7
        %v1306 = vsub.s32 %v1303, %v1305
        %v1307 = vrot.slane %v1300, %v1306
        %v1309 = vadd.f32 %v1216, %v1307
        %v1310 = vlaneseq
        %vm1311 = vcmp.ge.s32.totalorder %v1310, 0
        %vm1312 = vcmp.lt.s32.totalorder %v1310, 256
        %vm1313 = vmand %vm1311, %vm1312
        %1314 = vst.msk [vmem:[#allocation4] sm:$0x3] %vm1313, %v1309
        %v1315 = vld [vmem:[#allocation5] sm:$0xff]
        %v1316 = vld [vmem:[#allocation5 + $0x8] sm:$0xff]
        %v1317 = vld [vmem:[#allocation5 + $0x10] sm:$0xff]
        %v1318 = vld [vmem:[#allocation5 + $0x18] sm:$0xff]
        %v1319 = vld [vmem:[#allocation5 + $0x20] sm:$0xff]
        %v1320 = vld [vmem:[#allocation5 + $0x28] sm:$0xff]
        %v1321 = vld [vmem:[#allocation5 + $0x30] sm:$0xff]
        %v1322 = vld [vmem:[#allocation5 + $0x38] sm:$0xff]
        %v1323 = vld [vmem:[#allocation5 + $0x40] sm:$0xff]
        %v1324 = vld [vmem:[#allocation5 + $0x48] sm:$0xff]
        %v1325 = vld [vmem:[#allocation5 + $0x50] sm:$0xff]
        %v1326 = vld [vmem:[#allocation5 + $0x58] sm:$0xff]
        %v1327 = vld [vmem:[#allocation5 + $0x60] sm:$0xff]
        %v1328 = vld [vmem:[#allocation5 + $0x68] sm:$0xff]
        %v1329 = vld [vmem:[#allocation5 + $0x70] sm:$0xff]
        %v1330 = vld [vmem:[#allocation5 + $0x78] sm:$0xff]
        %v1332 = vlaneseq
        %v1333 = vshrl.u32 %v1332, 7
        %v1334 = vsub.s32 0, %v1333
        %v1335 = vrot.slane %v1011, %v1334
        %v1336 = vlaneseq
        %v1337 = vshrl.u32 %v1336, 7
        %v1338 = vsub.s32 1, %v1337
        %v1339 = vrot.slane %v1011, %v1338
        %v1342 = vmul.f32 %v1335, %v1315
        %v1343 = vmul.f32 %v1339, %v1316
        %v1344 = vmul.f32 %v1335, %v1317
        %v1345 = vmul.f32 %v1339, %v1318
        %v1346 = vmul.f32 %v1335, %v1319
        %v1347 = vmul.f32 %v1339, %v1320
        %v1348 = vmul.f32 %v1335, %v1321
        %v1349 = vmul.f32 %v1339, %v1322
        %v1350 = vmul.f32 %v1335, %v1323
        %v1351 = vmul.f32 %v1339, %v1324
        %v1352 = vmul.f32 %v1335, %v1325
        %v1353 = vmul.f32 %v1339, %v1326
        %v1354 = vmul.f32 %v1335, %v1327
        %v1355 = vmul.f32 %v1339, %v1328
        %v1356 = vmul.f32 %v1335, %v1329
        %v1357 = vmul.f32 %v1339, %v1330
        %v1358 = vpack.c.bf16 %v1092, %v1088
        %v1359 = vpack.c.bf16 %v1094, %v1090
        %v1360 = vpack.c.bf16 %v1100, %v1096
        %v1361 = vpack.c.bf16 %v1102, %v1098
        %v1362 = vpack.c.bf16 %v1108, %v1104
        %v1363 = vpack.c.bf16 %v1110, %v1106
        %v1364 = vpack.c.bf16 %v1116, %v1112
        %v1365 = vpack.c.bf16 %v1118, %v1114
        %v1366 = vpack.c.bf16 %v1124, %v1120
        %v1367 = vpack.c.bf16 %v1126, %v1122
        %v1368 = vpack.c.bf16 %v1132, %v1128
        %v1369 = vpack.c.bf16 %v1134, %v1130
        %v1370 = vpack.c.bf16 %v1140, %v1136
        %v1371 = vpack.c.bf16 %v1142, %v1138
        %v1372 = vpack.c.bf16 %v1148, %v1144
        %v1373 = vpack.c.bf16 %v1150, %v1146
        %v1374 = vpack.c.bf16 %v1156, %v1152
        %v1375 = vpack.c.bf16 %v1158, %v1154
        %v1376 = vpack.c.bf16 %v1164, %v1160
        %v1377 = vpack.c.bf16 %v1166, %v1162
        %v1378 = vpack.c.bf16 %v1172, %v1168
        %v1379 = vpack.c.bf16 %v1174, %v1170
        %v1380 = vpack.c.bf16 %v1180, %v1176
        %v1381 = vpack.c.bf16 %v1182, %v1178
        %v1382 = vpack.c.bf16 %v1188, %v1184
        %v1383 = vpack.c.bf16 %v1190, %v1186
        %v1384 = vpack.c.bf16 %v1196, %v1192
        %v1385 = vpack.c.bf16 %v1198, %v1194
        %v1386 = vpack.c.bf16 %v1204, %v1200
        %v1387 = vpack.c.bf16 %v1206, %v1202
        %v1388 = vpack.c.bf16 %v1212, %v1208
        %v1389 = vpack.c.bf16 %v1214, %v1210
        %1390 = vmatprep.subr.bf16.mxu0 %v1373
        %1391 = vmatpush1.bf16.msra.mxu0 %v1372
        %1392 = vmatprep.subr.bf16.mxu0 %v1371
        %1393 = vmatpush1.bf16.msra.mxu0 %v1370
        %1394 = vmatprep.subr.bf16.mxu0 %v1369
        %1395 = vmatpush1.bf16.msra.mxu0 %v1368
        %1396 = vmatprep.subr.bf16.mxu0 %v1367
        %1397 = vmatpush1.bf16.msra.mxu0 %v1366
        %1398 = vmatprep.subr.bf16.mxu0 %v1365
        %1399 = vmatpush1.bf16.msra.mxu0 %v1364
        %1400 = vmatprep.subr.bf16.mxu0 %v1363
        %1401 = vmatpush1.bf16.msra.mxu0 %v1362
        %1402 = vmatprep.subr.bf16.mxu0 %v1361
        %1403 = vmatpush1.bf16.msra.mxu0 %v1360
        %1404 = vmatprep.subr.bf16.mxu0 %v1359
        %1405 = vmatpush1.bf16.msra.mxu0 %v1358
        %1406 = vmatprep.subr.bf16.mxu0 %v1389
        %1407 = vmatpush2.bf16.msra.mxu0 %v1388
        %1408 = vmatprep.subr.bf16.mxu0 %v1387
        %1409 = vmatpush2.bf16.msra.mxu0 %v1386
        %1410 = vmatprep.subr.bf16.mxu0 %v1385
        %1411 = vmatpush2.bf16.msra.mxu0 %v1384
        %1412 = vmatprep.subr.bf16.mxu0 %v1383
        %1413 = vmatpush2.bf16.msra.mxu0 %v1382
        %1414 = vmatprep.subr.bf16.mxu0 %v1381
        %1415 = vmatpush2.bf16.msra.mxu0 %v1380
        %1416 = vmatprep.subr.bf16.mxu0 %v1379
        %1417 = vmatpush2.bf16.msra.mxu0 %v1378
        %1418 = vmatprep.subr.bf16.mxu0 %v1377
        %1419 = vmatpush2.bf16.msra.mxu0 %v1376
        %1420 = vmatprep.subr.bf16.mxu0 %v1375
        %1421 = vmatpush2.bf16.msra.mxu0 %v1374
        %1422 = vmatprep.mubr.bf16.mxu0 %v621
        %1423 = vmatmul.mubr.bf16.gmra.mxu0 %v620
        %v1424 = vpop.f32.mrf.mxu0
        %v1425 = vadd.f32 0.0, %v1424
        %v1426 = vpop.f32.mrf.mxu0
        %v1427 = vadd.f32 0.0, %v1426
        %v1428 = vpop.f32.mrf.mxu0
        %v1429 = vadd.f32 0.0, %v1428
        %v1430 = vpop.f32.mrf.mxu0
        %v1431 = vadd.f32 0.0, %v1430
        %1432 = vmatprep.mubr.bf16.mxu0 %v623
        %1433 = vmatmul.mubr.bf16.gmra.mxu0 %v622
        %v1434 = vpop.f32.mrf.mxu0
        %v1435 = vadd.f32 0.0, %v1434
        %v1436 = vpop.f32.mrf.mxu0
        %v1437 = vadd.f32 0.0, %v1436
        %v1438 = vpop.f32.mrf.mxu0
        %v1439 = vadd.f32 0.0, %v1438
        %v1440 = vpop.f32.mrf.mxu0
        %v1441 = vadd.f32 0.0, %v1440
        %1442 = vmatprep.mubr.bf16.mxu0 %v625
        %1443 = vmatmul.mubr.bf16.gmra.mxu0 %v624
        %v1444 = vpop.f32.mrf.mxu0
        %v1445 = vadd.f32 0.0, %v1444
        %v1446 = vpop.f32.mrf.mxu0
        %v1447 = vadd.f32 0.0, %v1446
        %v1448 = vpop.f32.mrf.mxu0
        %v1449 = vadd.f32 0.0, %v1448
        %v1450 = vpop.f32.mrf.mxu0
        %v1451 = vadd.f32 0.0, %v1450
        %1452 = vmatprep.mubr.bf16.mxu0 %v627
        %1453 = vmatmul.mubr.bf16.gmra.mxu0 %v626
        %v1454 = vpop.f32.mrf.mxu0
        %v1455 = vadd.f32 0.0, %v1454
        %v1456 = vpop.f32.mrf.mxu0
        %v1457 = vadd.f32 0.0, %v1456
        %v1458 = vpop.f32.mrf.mxu0
        %v1459 = vadd.f32 0.0, %v1458
        %v1460 = vpop.f32.mrf.mxu0
        %v1461 = vadd.f32 0.0, %v1460
        %1462 = vdwg.mxu0
        %v1463 = vadd.f32 %v1342, %v1425
        %v1464 = vadd.f32 %v1343, %v1427
        %v1465 = vadd.f32 %v1344, %v1429
        %v1466 = vadd.f32 %v1345, %v1431
        %v1467 = vadd.f32 %v1346, %v1435
        %v1468 = vadd.f32 %v1347, %v1437
        %v1469 = vadd.f32 %v1348, %v1439
        %v1470 = vadd.f32 %v1349, %v1441
        %v1471 = vadd.f32 %v1350, %v1445
        %v1472 = vadd.f32 %v1351, %v1447
        %v1473 = vadd.f32 %v1352, %v1449
        %v1474 = vadd.f32 %v1353, %v1451
        %v1475 = vadd.f32 %v1354, %v1455
        %v1476 = vadd.f32 %v1355, %v1457
        %v1477 = vadd.f32 %v1356, %v1459
        %v1478 = vadd.f32 %v1357, %v1461
        %1479 = vst [vmem:[#allocation5] sm:$0xff] %v1463
        %1480 = vst [vmem:[#allocation5 + $0x8] sm:$0xff] %v1464
        %1481 = vst [vmem:[#allocation5 + $0x10] sm:$0xff] %v1465
        %1482 = vst [vmem:[#allocation5 + $0x18] sm:$0xff] %v1466
        %1483 = vst [vmem:[#allocation5 + $0x20] sm:$0xff] %v1467
        %1484 = vst [vmem:[#allocation5 + $0x28] sm:$0xff] %v1468
        %1485 = vst [vmem:[#allocation5 + $0x30] sm:$0xff] %v1469
        %1486 = vst [vmem:[#allocation5 + $0x38] sm:$0xff] %v1470
        %1487 = vst [vmem:[#allocation5 + $0x40] sm:$0xff] %v1471
        %1488 = vst [vmem:[#allocation5 + $0x48] sm:$0xff] %v1472
        %1489 = vst [vmem:[#allocation5 + $0x50] sm:$0xff] %v1473
        %1490 = vst [vmem:[#allocation5 + $0x58] sm:$0xff] %v1474
        %1491 = vst [vmem:[#allocation5 + $0x60] sm:$0xff] %v1475
        %1492 = vst [vmem:[#allocation5 + $0x68] sm:$0xff] %v1476
        %1493 = vst [vmem:[#allocation5 + $0x70] sm:$0xff] %v1477
        %1494 = vst [vmem:[#allocation5 + $0x78] sm:$0xff] %v1478
        %1495 = vst.msk [vmem:[#allocation3] sm:$0x3] %vm1313, %v1008
        // Predicated region
        $region53: #{tpu_custom_call.1} parent=39 // pred_check
          %p1496 = pneg %p317
        $region54: #{tpu_custom_call.1} parent=39 // pred_check_branch
          %1498 = sbr.rel (%p1496) target = $region56
        $region55: #{tpu_custom_call.1} parent=39 // pred_region
          %s1499 = sld [smem:[#allocation6]]
          %v1500 = vld [vmem:[#allocation5] sm:$0xff]
          %v1501 = vld [vmem:[#allocation5 + $0x8] sm:$0xff]
          %v1502 = vld [vmem:[#allocation5 + $0x10] sm:$0xff]
          %v1503 = vld [vmem:[#allocation5 + $0x18] sm:$0xff]
          %v1504 = vld [vmem:[#allocation5 + $0x20] sm:$0xff]
          %v1505 = vld [vmem:[#allocation5 + $0x28] sm:$0xff]
          %v1506 = vld [vmem:[#allocation5 + $0x30] sm:$0xff]
          %v1507 = vld [vmem:[#allocation5 + $0x38] sm:$0xff]
          %v1508 = vld [vmem:[#allocation5 + $0x40] sm:$0xff]
          %v1509 = vld [vmem:[#allocation5 + $0x48] sm:$0xff]
          %v1510 = vld [vmem:[#allocation5 + $0x50] sm:$0xff]
          %v1511 = vld [vmem:[#allocation5 + $0x58] sm:$0xff]
          %v1512 = vld [vmem:[#allocation5 + $0x60] sm:$0xff]
          %v1513 = vld [vmem:[#allocation5 + $0x68] sm:$0xff]
          %v1514 = vld [vmem:[#allocation5 + $0x70] sm:$0xff]
          %v1515 = vld [vmem:[#allocation5 + $0x78] sm:$0xff]
          %v1516 = vld [vmem:[#allocation4] sm:$0x3]
          %v1518 = vlaneseq
          %v1519 = vshrl.u32 %v1518, 7
          %v1520 = vsub.s32 0, %v1519
          %v1521 = vrot.slane %v1516, %v1520
          %v1522 = vlaneseq
          %v1523 = vshrl.u32 %v1522, 7
          %v1524 = vsub.s32 1, %v1523
          %v1525 = vrot.slane %v1516, %v1524
          %v1528 = vrcp.pop %v1521
          %v1529 = vmul.f32 %v1500, %v1528
          %v1530 = vrcp.pop %v1525
          %v1531 = vmul.f32 %v1501, %v1530
          %v1532 = vmul.f32 %v1502, %v1528
          %v1533 = vmul.f32 %v1503, %v1530
          %v1534 = vmul.f32 %v1504, %v1528
          %v1535 = vmul.f32 %v1505, %v1530
          %v1536 = vmul.f32 %v1506, %v1528
          %v1537 = vmul.f32 %v1507, %v1530
          %v1538 = vmul.f32 %v1508, %v1528
          %v1539 = vmul.f32 %v1509, %v1530
          %v1540 = vmul.f32 %v1510, %v1528
          %v1541 = vmul.f32 %v1511, %v1530
          %v1542 = vmul.f32 %v1512, %v1528
          %v1543 = vmul.f32 %v1513, %v1530
          %v1544 = vmul.f32 %v1514, %v1528
          %v1545 = vmul.f32 %v1515, %v1530
          %v1546 = vstv %s1499
          %v1547 = vmul.f32 %v1546, %v1529
          %v1548 = vmul.f32 %v1546, %v1531
          %v1549 = vmul.f32 %v1546, %v1532
          %v1550 = vmul.f32 %v1546, %v1533
          %v1551 = vmul.f32 %v1546, %v1534
          %v1552 = vmul.f32 %v1546, %v1535
          %v1553 = vmul.f32 %v1546, %v1536
          %v1554 = vmul.f32 %v1546, %v1537
          %v1555 = vmul.f32 %v1546, %v1538
          %v1556 = vmul.f32 %v1546, %v1539
          %v1557 = vmul.f32 %v1546, %v1540
          %v1558 = vmul.f32 %v1546, %v1541
          %v1559 = vmul.f32 %v1546, %v1542
          %v1560 = vmul.f32 %v1546, %v1543
          %v1561 = vmul.f32 %v1546, %v1544
          %v1562 = vmul.f32 %v1546, %v1545
          %v1563 = vld [vmem:[%s272] sm:$0xff]
          %v1564 = vld [vmem:[%s272 + $0x8] sm:$0xff]
          %v1565 = vld [vmem:[%s272 + $0x10] sm:$0xff]
          %v1566 = vld [vmem:[%s272 + $0x18] sm:$0xff]
          %v1567 = vld [vmem:[%s272 + $0x20] sm:$0xff]
          %v1568 = vld [vmem:[%s272 + $0x28] sm:$0xff]
          %v1569 = vld [vmem:[%s272 + $0x30] sm:$0xff]
          %v1570 = vld [vmem:[%s272 + $0x38] sm:$0xff]
          %v1571 = vld [vmem:[%s272 + $0x40] sm:$0xff]
          %v1572 = vld [vmem:[%s272 + $0x48] sm:$0xff]
          %v1573 = vld [vmem:[%s272 + $0x50] sm:$0xff]
          %v1574 = vld [vmem:[%s272 + $0x58] sm:$0xff]
          %v1575 = vld [vmem:[%s272 + $0x60] sm:$0xff]
          %v1576 = vld [vmem:[%s272 + $0x68] sm:$0xff]
          %v1577 = vld [vmem:[%s272 + $0x70] sm:$0xff]
          %v1578 = vld [vmem:[%s272 + $0x78] sm:$0xff]
          %v1579 = vadd.f32 %v1547, %v1563
          %v1580 = vadd.f32 %v1548, %v1564
          %v1581 = vadd.f32 %v1549, %v1565
          %v1582 = vadd.f32 %v1550, %v1566
          %v1583 = vadd.f32 %v1551, %v1567
          %v1584 = vadd.f32 %v1552, %v1568
          %v1585 = vadd.f32 %v1553, %v1569
          %v1586 = vadd.f32 %v1554, %v1570
          %v1587 = vadd.f32 %v1555, %v1571
          %v1588 = vadd.f32 %v1556, %v1572
          %v1589 = vadd.f32 %v1557, %v1573
          %v1590 = vadd.f32 %v1558, %v1574
          %v1591 = vadd.f32 %v1559, %v1575
          %v1592 = vadd.f32 %v1560, %v1576
          %v1593 = vadd.f32 %v1561, %v1577
          %v1594 = vadd.f32 %v1562, %v1578
          %1595 = vst [vmem:[%s312] sm:$0xff] %v1579
          %1596 = vst [vmem:[%s312 + $0x8] sm:$0xff] %v1580
          %1597 = vst [vmem:[%s312 + $0x10] sm:$0xff] %v1581
          %1598 = vst [vmem:[%s312 + $0x18] sm:$0xff] %v1582
          %1599 = vst [vmem:[%s312 + $0x20] sm:$0xff] %v1583
          %1600 = vst [vmem:[%s312 + $0x28] sm:$0xff] %v1584
          %1601 = vst [vmem:[%s312 + $0x30] sm:$0xff] %v1585
          %1602 = vst [vmem:[%s312 + $0x38] sm:$0xff] %v1586
          %1603 = vst [vmem:[%s312 + $0x40] sm:$0xff] %v1587
          %1604 = vst [vmem:[%s312 + $0x48] sm:$0xff] %v1588
          %1605 = vst [vmem:[%s312 + $0x50] sm:$0xff] %v1589
          %1606 = vst [vmem:[%s312 + $0x58] sm:$0xff] %v1590
          %1607 = vst [vmem:[%s312 + $0x60] sm:$0xff] %v1591
          %1608 = vst [vmem:[%s312 + $0x68] sm:$0xff] %v1592
          %1609 = vst [vmem:[%s312 + $0x70] sm:$0xff] %v1593
          %1610 = vst [vmem:[%s312 + $0x78] sm:$0xff] %v1594
        $region56: #{tpu_custom_call.1} parent=39 // pred_fallthru
          _
        %s1611 = sand.u32 %s174, 1
        %s1612 = scalar_lea.sflag [#allocation9], %s1611
        %s1613 = sand.u32 %s174, 1
        %s1614 = smul.addr %s1613, 128
        %s1615 = scalar_lea.vmem [#allocation12], %s1614
        // Predicated region
        $region57: #{tpu_custom_call.1} parent=39 // pred_check
          %p1616 = pneg %p184
        $region58: #{tpu_custom_call.1} parent=39 // pred_check_branch
          %1618 = sbr.rel (%p1616) target = $region60
        $region59: #{tpu_custom_call.1} parent=39 // pred_region
          %s1619 = smul.u32 2, %s32
          %s1621 = ssub.s32 2048, 2048
          %1622 = vsyncadd %s1612, %s1621
          %s1623 = smul.addr %s31, 16
          %s1624 = sadd.s32 %s1619, %s1623
          %s1625 = smul.addr %s1624, 128
          %s1626 = scalar_lea.hbm %s5, %s1625
          %s1627 = sshll.u32 %s1615, 4
          %s1628 = int_to_ptr.vmem [resolvable:$true] %s1627
          %1633 = dma.vmem_to_hbm [thread:$0]  %s1628, 2048, %s1626, %s1612, 256, 256, 16
        $region60: #{tpu_custom_call.1} parent=39 // pred_fallthru
          _
      $region40: #{tpu_custom_call.1} parent=5 // pred_fallthru
        _
      %p1634 = scmp.le.s32.totalorder 2, %s21
      // Predicated region
      $region61: #{tpu_custom_call.1} parent=5 // pred_check
        %p1635 = pneg %p1634
      $region62: #{tpu_custom_call.1} parent=5 // pred_check_branch
        %1637 = sbr.rel (%p1635) target = $region64
      $region63: #{tpu_custom_call.1} parent=5 // pred_region
        %s1638 = ssub.s32 %s21, 2
        // Predicated region
        $region65: #{tpu_custom_call.1} parent=63 // pred_check
          %p1639 = pneg %p190
        $region66: #{tpu_custom_call.1} parent=63 // pred_check_branch
          %1641 = sbr.rel (%p1639) target = $region68
        $region67: #{tpu_custom_call.1} parent=63 // pred_region
          %s1642 = sand.u32 %s175, 1
          %s1643 = scalar_lea.sflag [#allocation9], %s1642
          %s1644 = sand.u32 %s175, 1
          %s1645 = smul.addr %s1644, 128
          %s1646 = scalar_lea.vmem [#allocation12], %s1645
          %1647 = dma.done %s1643, 2048
        $region68: #{tpu_custom_call.1} parent=63 // pred_fallthru
          _
      $region64: #{tpu_custom_call.1} parent=5 // pred_fallthru
        _
    $region6: #{tpu_custom_call.1} parent=1 // loop_footer
      %s25 = sadd.s32 1, %s21
    $region7: #{tpu_custom_call.1} parent=1 // loop_footer_branch
      %20 = sbr.rel target = $region3
    $region8: #{tpu_custom_call.1} parent=1 // loop_exit
      _
    %1648 = vsyncpa [#allocation8], 1
    %s1649 = scalar_lea.sflag [#allocation8], 1
    %1650 = vsyncpa %s1649, 1
    %1651 = vsyncpa [#allocation11], 1
    %s1652 = scalar_lea.sflag [#allocation11], 1
    %1653 = vsyncpa %s1652, 1
    %1654 = vsyncpa [#allocation9], 1
    %s1655 = scalar_lea.sflag [#allocation9], 1
    %1656 = vsyncpa %s1655, 1

</llo_original>
